<compile_context>
chip_gen: v7x
topology: tpu7x:2x2x1
jax: 0.10.0
libtpu: 0.0.40
codegen_flags: <defaults>
</compile_context>

<pallas_src>
import functools
import numpy as np
import jax
import jax.numpy as jnp
from jax import lax
from jax.experimental import pallas as pl
from jax.experimental.pallas import tpu as pltpu


# ----------------------------- Pallas kernel ------------------------------ #
def _wmsa_tile_kernel(*refs, n_heads, head_dim, tw, win_np, shifted):
    """One (batch, window-tile) grid step: TW windows, all heads, batched."""
    if shifted:
        (x_ref, wqkv_ref, bqkv_ref, rel_ref, hmask_ref, smask_ref,
         wout_t_ref, bout_t_ref, o_ref) = refs
    else:
        (x_ref, wqkv_ref, bqkv_ref, rel_ref, hmask_ref,
         wout_t_ref, bout_t_ref, o_ref) = refs
        smask_ref = None

    C = n_heads * head_dim
    rows = tw * win_np

    # --- QKV projection: one (ROWS, C) @ (C, 3C) matmul, bf16 in / f32 acc.
    x = x_ref[0]                                                  # (rows, C) bf16
    qkv = jnp.dot(x, wqkv_ref[...],
                  preferred_element_type=jnp.float32) + bqkv_ref[...]
    qkv = qkv.astype(jnp.bfloat16).reshape(tw, win_np, 3 * C)     # f32 qkv dies here

    q3 = qkv[:, :, 0 * C:1 * C]                                   # (tw, NP, C) bf16
    k3 = qkv[:, :, 1 * C:2 * C]
    v3 = qkv[:, :, 2 * C:3 * C]

    # --- pack heads into the row axis: qexp[w, h, p, c] = q[w, p, c] * [c in head h]
    hmask = hmask_ref[...]                                        # (NH, 1, C) f32 0/1
    qexp = q3[:, None, :, :] * hmask.astype(jnp.bfloat16)[None]   # (tw, NH, NP, C)
    qexp = qexp.reshape(tw, n_heads * win_np, C)

    # --- sim: one batched dot_general over the window tile (scale pre-folded).
    sim = jnp.einsum('bqc,bkc->bqk', qexp, k3,
                     preferred_element_type=jnp.float32)          # (tw, NH*NP, NP)
    sim = sim.reshape(tw, n_heads, win_np, win_np)
    sim = sim + rel_ref[...][None]
    if shifted:
        sim = sim + smask_ref[...][:, None]

    # --- softmax in f32, EUP approximate reciprocal for the denominator.
    sim = sim - jnp.max(sim, axis=-1, keepdims=True)
    e = jnp.exp(sim)
    inv = pl.reciprocal(jnp.sum(e, axis=-1, keepdims=True), approx=True)
    probs = (e * inv).astype(jnp.bfloat16)
    probs = probs.reshape(tw, n_heads * win_np, win_np)

    # --- probs @ v, batched over the window tile; the packed head axis is
    #     collapsed exactly with the same head-channel mask.
    ctxe = jnp.einsum('bqk,bkc->bqc', probs, v3,
                      preferred_element_type=jnp.float32)         # (tw, NH*NP, C)
    ctxe = ctxe.reshape(tw, n_heads, win_np, C)
    ctx = jnp.sum(ctxe * hmask[None], axis=1)                     # (tw, NP, C) f32
    ctx = ctx.reshape(rows, C).astype(jnp.bfloat16)

    # --- single K=C output projection, emitted transposed -> lane-dense store.
    out_t = lax.dot_general(wout_t_ref[...], ctx,
                            (((1,), (1,)), ((), ())),
                            preferred_element_type=jnp.float32)   # (OUT, rows)
    o_ref[0, 0] = (out_t + bout_t_ref[...]).astype(o_ref.dtype)


def _wmsa_pallas(xw, wqkv, bqkv, rel_bias, hmask, smask, wout_t, bout_t,
                 *, n_windows, win_np, n_heads, head_dim, tw, shifted):
    B, _, C = xw.shape
    OUT = wout_t.shape[0]
    nwt = n_windows // tw
    rows_t = tw * win_np

    kernel = functools.partial(
        _wmsa_tile_kernel, n_heads=n_heads, head_dim=head_dim,
        tw=tw, win_np=win_np, shifted=shifted)

    in_specs = [
        pl.BlockSpec((1, rows_t, C), lambda b, t: (b, t, 0)),             # x (bf16)
        pl.BlockSpec((C, 3 * C), lambda b, t: (0, 0)),                    # wqkv (bf16)
        pl.BlockSpec((1, 3 * C), lambda b, t: (0, 0)),                    # bqkv (f32)
        pl.BlockSpec((n_heads, win_np, win_np), lambda b, t: (0, 0, 0)),  # rel bias
        pl.BlockSpec((n_heads, 1, C), lambda b, t: (0, 0, 0)),            # head mask
    ]
    args = [xw, wqkv, bqkv, rel_bias, hmask]
    if shifted:
        in_specs.append(pl.BlockSpec((tw, win_np, win_np),
                                     lambda b, t: (t, 0, 0)))             # shift mask
        args.append(smask)
    in_specs += [
        pl.BlockSpec((OUT, C), lambda b, t: (0, 0)),                      # wout^T (bf16)
        pl.BlockSpec((OUT, 1), lambda b, t: (0, 0)),                      # bout^T (f32)
    ]
    args += [wout_t, bout_t]

    return pl.pallas_call(
        kernel,
        out_shape=jax.ShapeDtypeStruct((B, nwt, OUT, rows_t), jnp.float32),
        grid=(B, nwt),
        in_specs=in_specs,
        out_specs=pl.BlockSpec((1, 1, OUT, rows_t), lambda b, t: (b, t, 0, 0)),
        compiler_params=pltpu.CompilerParams(
            dimension_semantics=("parallel", "parallel"),
            vmem_limit_bytes=32 * 1024 * 1024),
    )(*args)                                                      # (B, NWT, OUT, ROWS_T)


# ------------------------------- glue (JAX) -------------------------------- #
def _relative_index(p):
    cord = np.array([[i, j] for i in range(p) for j in range(p)])
    relation = cord[:, None, :] - cord[None, :, :] + p - 1
    return relation[:, :, 0], relation[:, :, 1]


def _relative_embedding(rel_params, p):
    """rel_params: (n_heads, 2p-1, 2p-1) -> (n_heads, p*p, p*p)."""
    i0, i1 = _relative_index(p)
    return rel_params[:, i0, i1]


def _generate_additive_mask(hw, ww, p, shift, type_):
    nw = hw * ww
    if type_ == 'W':
        return jnp.zeros((nw, p * p, p * p), jnp.float32)
    m = np.zeros((hw, ww, p, p, p, p), dtype=bool)
    s = p - shift
    m[-1, :, :s, :, s:, :] = True
    m[-1, :, s:, :, :s, :] = True
    m[:, -1, :, :s, :, s:] = True
    m[:, -1, :, s:, :, :s] = True
    m = m.reshape(nw, p * p, p * p)
    return jnp.asarray(np.where(m, np.float32(-1e30), np.float32(0.0)))


def _head_channel_mask(n_heads, head_dim):
    C = n_heads * head_dim
    c = np.arange(C)
    m = (c[None, :] // head_dim == np.arange(n_heads)[:, None]).astype(np.float32)
    return jnp.asarray(m.reshape(n_heads, 1, C))


def _pick_tw(n_windows, win_np, max_rows=1024):
    """Windows per grid step: largest divisor giving lane-friendly row counts."""
    divisors = [d for d in range(1, n_windows + 1) if n_windows % d == 0]
    good = [d for d in divisors
            if (d * win_np) % 128 == 0 and d * win_np <= max_rows and d < n_windows]
    if not good:
        good = [d for d in divisors
                if (d * win_np) % 8 == 0 and d * win_np <= max_rows]
    if not good:
        good = [n_windows]
    return max(good)


def init_wmsa_params(key, input_dim, output_dim, head_dim, window_size):
    n_heads = input_dim // head_dim
    k1, k2, k3, k4, k5 = jax.random.split(key, 5)
    return dict(
        wqkv=jax.random.normal(k1, (input_dim, 3 * input_dim), jnp.float32) * 0.02,
        bqkv=jax.random.normal(k2, (1, 3 * input_dim), jnp.float32) * 0.02,
        wout=jax.random.normal(k3, (input_dim, output_dim), jnp.float32) * 0.02,
        bout=jax.random.normal(k4, (1, output_dim), jnp.float32) * 0.02,
        rel=jax.random.normal(k5, (n_heads, 2 * window_size - 1,
                                   2 * window_size - 1), jnp.float32) * 0.02,
    )


@functools.partial(jax.jit, static_argnames=("input_dim", "output_dim",
                                             "head_dim", "window_size", "type_"))
def wmsa_forward(x, params, *, input_dim, output_dim, head_dim, window_size, type_):
    p = window_size
    n_heads = input_dim // head_dim
    scale = float(head_dim) ** (-0.5)
    shifted = (type_ != 'W')
    b, H, W, C = x.shape
    if shifted:
        sh = p // 2
        x = jnp.roll(x, shift=(-sh, -sh), axis=(1, 2))
    hw, ww = H // p, W // p
    nw, npp = hw * ww, p * p
    tw = _pick_tw(nw, npp)

    # 'b (w1 p1) (w2 p2) c -> b (w1 w2 p1 p2) c', pre-cast to bf16 (half the DMA).
    xw = x.reshape(b, hw, p, ww, p, C).transpose(0, 1, 3, 2, 4, 5)
    xw = xw.reshape(b, nw * npp, C).astype(jnp.bfloat16)

    # Fold the attention scale into the q weights / bias (free, XLA side).
    wqkv = jnp.concatenate([params['wqkv'][:, :C] * scale, params['wqkv'][:, C:]],
                           axis=1).astype(jnp.bfloat16)
    bqkv = jnp.concatenate([params['bqkv'][:, :C] * scale, params['bqkv'][:, C:]],
                           axis=1).astype(jnp.float32)
    wout_t = params['wout'].T.astype(jnp.bfloat16)                     # (OUT, C)
    bout_t = params['bout'].reshape(output_dim, 1).astype(jnp.float32)  # (OUT, 1)

    rel_bias = _relative_embedding(params['rel'], p).astype(jnp.float32)
    hmask = _head_channel_mask(n_heads, head_dim)
    smask = _generate_additive_mask(hw, ww, p, p // 2, type_) if shifted else None

    out_t = _wmsa_pallas(xw, wqkv, bqkv, rel_bias, hmask, smask, wout_t, bout_t,
                         n_windows=nw, win_np=npp, n_heads=n_heads,
                         head_dim=head_dim, tw=tw, shifted=shifted)

    # (B, NWT, OUT, ROWS_T) -> (b, H, W, OUT)
    out = out_t.transpose(0, 1, 3, 2).reshape(b, hw, ww, p, p, output_dim)
    out = out.transpose(0, 1, 3, 2, 4, 5).reshape(b, H, W, output_dim)
    if shifted:
        sh = p // 2
        out = jnp.roll(out, shift=(sh, sh), axis=(1, 2))
    return out


# --------------------------- pure-JAX reference ---------------------------- #
def wmsa_reference(x, params, *, input_dim, output_dim, head_dim, window_size, type_):
    p = window_size
    n_heads = input_dim // head_dim
    scale = float(head_dim) ** (-0.5)
    b, H, W, C = x.shape
    if type_ != 'W':
        sh = p // 2
        x = jnp.roll(x, shift=(-sh, -sh), axis=(1, 2))
    hw, ww = H // p, W // p
    xw = x.reshape(b, hw, p, ww, p, C).transpose(0, 1, 3, 2, 4, 5).reshape(
        b, hw * ww, p * p, C)
    qkv = xw @ params['wqkv'] + params['bqkv'][0]
    qkv = qkv.reshape(b, hw * ww, p * p, 3 * n_heads, head_dim)
    q = qkv[..., :n_heads, :]
    k = qkv[..., n_heads:2 * n_heads, :]
    v = qkv[..., 2 * n_heads:, :]
    sim = jnp.einsum('bwphc,bwqhc->bwhpq', q, k) * scale
    rel = _relative_embedding(params['rel'], p).astype(jnp.float32)
    sim = sim + rel[None, None]
    mask = _generate_additive_mask(hw, ww, p, p // 2, type_)
    sim = sim + mask[None, :, None]
    probs = jax.nn.softmax(sim, axis=-1)
    out = jnp.einsum('bwhpq,bwqhc->bwphc', probs, v)
    out = out.reshape(b, hw * ww, p * p, input_dim)
    out = out @ params['wout'] + params['bout'][0]
    out = out.reshape(b, hw, ww, p, p, output_dim).transpose(0, 1, 3, 2, 4, 5)
    out = out.reshape(b, hw * p, ww * p, output_dim)
    if type_ != 'W':
        sh = p // 2
        out = jnp.roll(out, shift=(sh, sh), axis=(1, 2))
    return out


# ---------------------------------- main ----------------------------------- #
if __name__ == "__main__":
    input_dim = 32
    output_dim = 32
    head_dim = 8
    window_size = 4

    key = jax.random.PRNGKey(0)
    kx, kp = jax.random.split(key)
    x = jax.random.normal(kx, (2, 16, 16, input_dim), jnp.float32)   # [b, h, w, c]
    params = init_wmsa_params(kp, input_dim, output_dim, head_dim, window_size)

    for type_ in ('W', 'SW'):    # 'SW' exercises cyclic shift + attention mask
        out = wmsa_forward(x, params, input_dim=input_dim, output_dim=output_dim,
                           head_dim=head_dim, window_size=window_size, type_=type_)
        out = jax.block_until_ready(out)

        ref = wmsa_reference(x, params, input_dim=input_dim, output_dim=output_dim,
                             head_dim=head_dim, window_size=window_size, type_=type_)
        ref = jax.block_until_ready(ref)

        assert out.shape == (2, 16, 16, output_dim), out.shape
        max_err = float(jnp.max(jnp.abs(out - ref)))
        assert max_err < 5e-3, f"type {type_}: mismatch vs reference: {max_err}"

    print("KERNEL_OK")
</pallas_src>

<mosaic_0001>
module attributes {stable_mosaic.version = 11 : i64} {
  func.func @_wmsa_tile_kernel(%arg0: i32, %arg1: i32, %arg2: memref<1x128x32xbf16, #tpu.memory_space<vmem>>, %arg3: memref<32x96xbf16, #tpu.memory_space<vmem>>, %arg4: memref<1x96xf32, #tpu.memory_space<vmem>>, %arg5: memref<4x16x16xf32, #tpu.memory_space<vmem>>, %arg6: memref<4x1x32xf32, #tpu.memory_space<vmem>>, %arg7: memref<32x32xbf16, #tpu.memory_space<vmem>>, %arg8: memref<32x1xf32, #tpu.memory_space<vmem>>, %arg9: memref<1x1x32x128xf32, #tpu.memory_space<vmem>>) attributes {dimension_semantics = [#tpu.dimension_semantics<parallel>, #tpu.dimension_semantics<parallel>], iteration_bounds = array<i64: 2, 2>, scalar_prefetch = 0 : i64, scratch_operands = 0 : i64, tpu.core_type = #tpu.core_type<tc>, window_params = [{transform_indices = @transform_0, window_bounds = array<i64: 1, 128, 32>}, {pipeline_mode = #tpu.pipeline_mode<synchronous>, transform_indices = @transform_1, window_bounds = array<i64: 32, 96>}, {pipeline_mode = #tpu.pipeline_mode<synchronous>, transform_indices = @transform_2, window_bounds = array<i64: 1, 96>}, {pipeline_mode = #tpu.pipeline_mode<synchronous>, transform_indices = @transform_3, window_bounds = array<i64: 4, 16, 16>}, {pipeline_mode = #tpu.pipeline_mode<synchronous>, transform_indices = @transform_4, window_bounds = array<i64: 4, 1, 32>}, {pipeline_mode = #tpu.pipeline_mode<synchronous>, transform_indices = @transform_5, window_bounds = array<i64: 32, 32>}, {pipeline_mode = #tpu.pipeline_mode<synchronous>, transform_indices = @transform_6, window_bounds = array<i64: 32, 1>}, {transform_indices = @transform_7, window_bounds = array<i64: 1, 1, 32, 128>}]} {
    %c0 = arith.constant 0 : index
    %c0_0 = arith.constant 0 : index
    %c0_1 = arith.constant 0 : index
    %0 = vector.load %arg2[%c0, %c0_0, %c0_1] : memref<1x128x32xbf16, #tpu.memory_space<vmem>>, vector<1x128x32xbf16>
    %1 = vector.shape_cast %0 : vector<1x128x32xbf16> to vector<128x32xbf16>
    %c0_2 = arith.constant 0 : index
    %c0_3 = arith.constant 0 : index
    %2 = vector.load %arg3[%c0_2, %c0_3] : memref<32x96xbf16, #tpu.memory_space<vmem>>, vector<32x96xbf16>
    %cst = arith.constant dense<0.000000e+00> : vector<128x96xf32>
    %3 = tpu.matmul %1, %2, %cst {dimension_numbers = #tpu.dot_dimension_numbers<[1], [0], [0], [1], [0, 0, 1, 1], [], []>} : vector<128x32xbf16>, vector<32x96xbf16>, vector<128x96xf32> -> vector<128x96xf32>
    %c0_4 = arith.constant 0 : index
    %c0_5 = arith.constant 0 : index
    %4 = vector.load %arg4[%c0_4, %c0_5] : memref<1x96xf32, #tpu.memory_space<vmem>>, vector<1x96xf32>
    %5 = vector.broadcast %4 : vector<1x96xf32> to vector<128x96xf32>
    %6 = arith.addf %3, %5 : vector<128x96xf32>
    %7 = arith.truncf %6 : vector<128x96xf32> to vector<128x96xbf16>
    %8 = vector.shape_cast %7 : vector<128x96xbf16> to vector<8x16x96xbf16>
    %9 = vector.extract_strided_slice %8 {offsets = [0, 0, 0], sizes = [8, 16, 32], strides = [1, 1, 1]} : vector<8x16x96xbf16> to vector<8x16x32xbf16>
    %10 = vector.extract_strided_slice %8 {offsets = [0, 0, 32], sizes = [8, 16, 32], strides = [1, 1, 1]} : vector<8x16x96xbf16> to vector<8x16x32xbf16>
    %11 = vector.extract_strided_slice %8 {offsets = [0, 0, 64], sizes = [8, 16, 32], strides = [1, 1, 1]} : vector<8x16x96xbf16> to vector<8x16x32xbf16>
    %c0_6 = arith.constant 0 : index
    %c0_7 = arith.constant 0 : index
    %c0_8 = arith.constant 0 : index
    %12 = vector.load %arg6[%c0_6, %c0_7, %c0_8] : memref<4x1x32xf32, #tpu.memory_space<vmem>>, vector<4x1x32xf32>
    %13 = vector.shape_cast %9 : vector<8x16x32xbf16> to vector<8x1x16x32xbf16>
    %14 = arith.truncf %12 : vector<4x1x32xf32> to vector<4x1x32xbf16>
    %15 = vector.shape_cast %14 : vector<4x1x32xbf16> to vector<1x4x1x32xbf16>
    %16 = vector.broadcast %13 : vector<8x1x16x32xbf16> to vector<8x4x16x32xbf16>
    %17 = vector.broadcast %15 : vector<1x4x1x32xbf16> to vector<8x4x16x32xbf16>
    %18 = arith.mulf %16, %17 : vector<8x4x16x32xbf16>
    %19 = vector.shape_cast %18 : vector<8x4x16x32xbf16> to vector<8x64x32xbf16>
    "tpu.trace_start"() <{level = 10 : i32, message = "bqc,bkc->bqk"}> : () -> ()
    %cst_9 = arith.constant dense<0.000000e+00> : vector<8x64x16xf32>
    %20 = tpu.matmul %19, %10, %cst_9 {dimension_numbers = #tpu.dot_dimension_numbers<[2], [2], [1], [1], [0, 0, 0, 1, 1, 1], [0], [0]>} : vector<8x64x32xbf16>, vector<8x16x32xbf16>, vector<8x64x16xf32> -> vector<8x64x16xf32>
    "tpu.trace_stop"() : () -> ()
    %21 = vector.shape_cast %20 : vector<8x64x16xf32> to vector<8x4x16x16xf32>
    %c0_10 = arith.constant 0 : index
    %c0_11 = arith.constant 0 : index
    %c0_12 = arith.constant 0 : index
    %22 = vector.load %arg5[%c0_10, %c0_11, %c0_12] : memref<4x16x16xf32, #tpu.memory_space<vmem>>, vector<4x16x16xf32>
    %23 = vector.shape_cast %22 : vector<4x16x16xf32> to vector<1x4x16x16xf32>
    %24 = vector.broadcast %23 : vector<1x4x16x16xf32> to vector<8x4x16x16xf32>
    %25 = arith.addf %21, %24 : vector<8x4x16x16xf32>
    %cst_13 = arith.constant dense<0xFF800000> : vector<8x4x16xf32>
    %26 = vector.multi_reduction <maximumf>, %25, %cst_13 [3] : vector<8x4x16x16xf32> to vector<8x4x16xf32>
    %27 = vector.shape_cast %26 : vector<8x4x16xf32> to vector<8x4x16x1xf32>
    %28 = vector.broadcast %27 : vector<8x4x16x1xf32> to vector<8x4x16x16xf32>
    %29 = arith.subf %25, %28 : vector<8x4x16x16xf32>
    %30 = math.exp %29 : vector<8x4x16x16xf32>
    %cst_14 = arith.constant dense<0.000000e+00> : vector<8x4x16xf32>
    %31 = vector.multi_reduction <add>, %30, %cst_14 [3] : vector<8x4x16x16xf32> to vector<8x4x16xf32>
    %32 = vector.shape_cast %31 : vector<8x4x16xf32> to vector<8x4x16x1xf32>
    %33 = tpu.reciprocal %32 {approx = true} : vector<8x4x16x1xf32> -> vector<8x4x16x1xf32>
    %34 = vector.broadcast %33 : vector<8x4x16x1xf32> to vector<8x4x16x16xf32>
    %35 = arith.mulf %30, %34 : vector<8x4x16x16xf32>
    %36 = arith.truncf %35 : vector<8x4x16x16xf32> to vector<8x4x16x16xbf16>
    %37 = vector.shape_cast %36 : vector<8x4x16x16xbf16> to vector<8x64x16xbf16>
    "tpu.trace_start"() <{level = 10 : i32, message = "bqk,bkc->bqc"}> : () -> ()
    %cst_15 = arith.constant dense<0.000000e+00> : vector<8x64x32xf32>
    %38 = tpu.matmul %37, %11, %cst_15 {dimension_numbers = #tpu.dot_dimension_numbers<[2], [1], [1], [2], [0, 0, 0, 1, 1, 2], [0], [0]>} : vector<8x64x16xbf16>, vector<8x16x32xbf16>, vector<8x64x32xf32> -> vector<8x64x32xf32>
    "tpu.trace_stop"() : () -> ()
    %39 = vector.shape_cast %38 : vector<8x64x32xf32> to vector<8x4x16x32xf32>
    %40 = vector.shape_cast %12 : vector<4x1x32xf32> to vector<1x4x1x32xf32>
    %41 = vector.broadcast %40 : vector<1x4x1x32xf32> to vector<8x4x16x32xf32>
    %42 = arith.mulf %39, %41 : vector<8x4x16x32xf32>
    %cst_16 = arith.constant dense<0.000000e+00> : vector<8x16x32xf32>
    %43 = vector.multi_reduction <add>, %42, %cst_16 [1] : vector<8x4x16x32xf32> to vector<8x16x32xf32>
    %44 = vector.shape_cast %43 : vector<8x16x32xf32> to vector<128x32xf32>
    %45 = arith.truncf %44 : vector<128x32xf32> to vector<128x32xbf16>
    %c0_17 = arith.constant 0 : index
    %c0_18 = arith.constant 0 : index
    %46 = vector.load %arg7[%c0_17, %c0_18] : memref<32x32xbf16, #tpu.memory_space<vmem>>, vector<32x32xbf16>
    %cst_19 = arith.constant dense<0.000000e+00> : vector<32x128xf32>
    %47 = tpu.matmul %46, %45, %cst_19 {dimension_numbers = #tpu.dot_dimension_numbers<[1], [1], [0], [0], [0, 0, 1, 0], [], []>} : vector<32x32xbf16>, vector<128x32xbf16>, vector<32x128xf32> -> vector<32x128xf32>
    %c0_20 = arith.constant 0 : index
    %c0_21 = arith.constant 0 : index
    %48 = vector.load %arg8[%c0_20, %c0_21] : memref<32x1xf32, #tpu.memory_space<vmem>>, vector<32x1xf32>
    %49 = vector.broadcast %48 : vector<32x1xf32> to vector<32x128xf32>
    %50 = arith.addf %47, %49 : vector<32x128xf32>
    %c0_22 = arith.constant 0 : index
    %c0_23 = arith.constant 0 : index
    %c0_24 = arith.constant 0 : index
    %c0_25 = arith.constant 0 : index
    %51 = vector.load %arg9[%c0_22, %c0_23, %c0_24, %c0_25] : memref<1x1x32x128xf32, #tpu.memory_space<vmem>>, vector<1x1x32x128xf32>
    %52 = vector.shape_cast %51 : vector<1x1x32x128xf32> to vector<32x128xf32>
    %53 = vector.shape_cast %50 : vector<32x128xf32> to vector<1x1x32x128xf32>
    tpu.vector_store %arg9[%c0_22, %c0_23, %c0_24, %c0_25], %53 {strides = array<i32>} : memref<1x1x32x128xf32, #tpu.memory_space<vmem>>, vector<1x1x32x128xf32>,
    return
  }
  func.func @transform_0(%arg0: i32, %arg1: i32) -> (i32, i32, i32) {
    %c0_i32 = arith.constant 0 : i32
    %c0_i32_0 = arith.constant 0 : i32
    return %arg0, %arg1, %c0_i32 : i32, i32, i32
  }
  func.func @transform_1(%arg0: i32, %arg1: i32) -> (i32, i32) {
    %c0_i32 = arith.constant 0 : i32
    %c0_i32_0 = arith.constant 0 : i32
    %c0_i32_1 = arith.constant 0 : i32
    return %c0_i32, %c0_i32_0 : i32, i32
  }
  func.func @transform_2(%arg0: i32, %arg1: i32) -> (i32, i32) {
    %c0_i32 = arith.constant 0 : i32
    %c0_i32_0 = arith.constant 0 : i32
    %c0_i32_1 = arith.constant 0 : i32
    return %c0_i32, %c0_i32_0 : i32, i32
  }
  func.func @transform_3(%arg0: i32, %arg1: i32) -> (i32, i32, i32) {
    %c0_i32 = arith.constant 0 : i32
    %c0_i32_0 = arith.constant 0 : i32
    %c0_i32_1 = arith.constant 0 : i32
    %c0_i32_2 = arith.constant 0 : i32
    return %c0_i32, %c0_i32_0, %c0_i32_1 : i32, i32, i32
  }
  func.func @transform_4(%arg0: i32, %arg1: i32) -> (i32, i32, i32) {
    %c0_i32 = arith.constant 0 : i32
    %c0_i32_0 = arith.constant 0 : i32
    %c0_i32_1 = arith.constant 0 : i32
    %c0_i32_2 = arith.constant 0 : i32
    return %c0_i32, %c0_i32_0, %c0_i32_1 : i32, i32, i32
  }
  func.func @transform_5(%arg0: i32, %arg1: i32) -> (i32, i32) {
    %c0_i32 = arith.constant 0 : i32
    %c0_i32_0 = arith.constant 0 : i32
    %c0_i32_1 = arith.constant 0 : i32
    return %c0_i32, %c0_i32_0 : i32, i32
  }
  func.func @transform_6(%arg0: i32, %arg1: i32) -> (i32, i32) {
    %c0_i32 = arith.constant 0 : i32
    %c0_i32_0 = arith.constant 0 : i32
    %c0_i32_1 = arith.constant 0 : i32
    return %c0_i32, %c0_i32_0 : i32, i32
  }
  func.func @transform_7(%arg0: i32, %arg1: i32) -> (i32, i32, i32, i32) {
    %c0_i32 = arith.constant 0 : i32
    %c0_i32_0 = arith.constant 0 : i32
    %c0_i32_1 = arith.constant 0 : i32
    return %arg0, %arg1, %c0_i32, %c0_i32_0 : i32, i32, i32, i32
  }
}

</mosaic_0001>

<llo_original>
// kernel: wmsa_forward.1
$region0: #{wmsa_forward.1}
  #allocation0 [shape = 'u32[]', space=smem, size = 0x4, offset = 0x4, fixed_abs, tag = 'smem constant byte address 0x4 - core index']
  #allocation1 [shape = 'u32[144,128]{1,0:T(1,128)}', space=vmem, size = 0x12000, scoped, tag = 'internal scratch']
  %s0 = inlined_call_operand.vmem [shape: bf16[2,256,32], index: 0, kind: input, shape index: {}]
  %s1 = inlined_call_operand.vmem [shape: bf16[32,96], index: 1, kind: input, shape index: {}]
  %s2 = inlined_call_operand.vmem [shape: f32[1,96], index: 2, kind: input, shape index: {}]
  %s3 = inlined_call_operand.vmem [shape: f32[4,16,16], index: 3, kind: input, shape index: {}]
  %s4 = inlined_call_operand.vmem [shape: f32[4,1,32], index: 4, kind: input, shape index: {}]
  %s5 = inlined_call_operand.vmem [shape: bf16[32,32], index: 5, kind: input, shape index: {}]
  %s6 = inlined_call_operand.vmem [shape: f32[32,1], index: 6, kind: input, shape index: {}]
  %s7 = inlined_call_operand.vmem [shape: f32[2,2,32,128], index: 7, kind: output, shape index: {}]
  %s8 = sld [smem:[#allocation0]]
  $region61: #{wmsa_forward.1} parent=0
    _
  %s10 = ssub.s32 1, %s8
  %s11 = scalar_select 0, %s10, %s8
  loop: start=0, step=1, limit=6
  $region2: #{wmsa_forward.1} parent=0 // loop_pre_header
    _
  $region3: #{wmsa_forward.1} parent=0 // loop_header
    %s13 = sphi 0, %s17
    %p14 = scmp.ge.s32.totalorder %s13, 6
    %s20 = sphi 0, %s32
    %s21 = sphi 0, %s28
    %s22 = sphi 0, %s20
    %s23 = sphi 0, %s21
    %s24 = sphi 0, %s22
    %s25 = sphi 0, %s23
    %s37 = sphi 0, %s39
    %s40 = sphi 0, %s37
    %s41 = sphi 0, %s40
    %s57 = sphi 0, %s41
    %s61 = sphi 0, %s61
    %s63 = sphi 0, %s61
    %s64 = sphi 0, %s63
    %s78 = sphi 0, %s64
    %s82 = sphi 0, %s82
    %s84 = sphi 0, %s82
    %s85 = sphi 0, %s84
    %s99 = sphi 0, %s85
    %s103 = sphi 0, %s103
    %s105 = sphi 0, %s103
    %s106 = sphi 0, %s105
    %s120 = sphi 0, %s106
    %s124 = sphi 0, %s124
    %s126 = sphi 0, %s124
    %s127 = sphi 0, %s126
    %s141 = sphi 0, %s127
    %s145 = sphi 0, %s145
    %s147 = sphi 0, %s145
    %s148 = sphi 0, %s147
    %s162 = sphi 0, %s148
    %s166 = sphi 0, %s166
    %s168 = sphi 0, %s166
    %s169 = sphi 0, %s168
    %s183 = sphi 0, %s169
    %s191 = sphi 0, %s193
    %s194 = sphi 0, %s191
    %s195 = sphi 0, %s194
    %s211 = sphi 0, %s195
  $region4: #{wmsa_forward.1} parent=0 // loop_header_branch
    %16 = sbr.rel (%p14) target = $region8
  $region5: #{wmsa_forward.1} parent=0 // loop_body
    %s18 = ssub.s32 %s13, 1
    %s19 = ssub.s32 %s13, 2
    %s26 = sadd.s32 1, %s21
    %p27 = scmp.ge.s32.totalorder %s26, 2
    %s28 = scalar_select %p27, 0, %s26
    %s29 = sadd.s32 1, %s20
    %s30 = scalar_select %p27, %s29, %s20
    %p31 = scmp.ge.s32.totalorder %s30, 2
    %s32 = scalar_select %p31, 0, %s30
    %s33 = ssub.s32 %s20, %s32
    %s34 = ssub.s32 %s21, %s28
    %s35 = sor.u32 %s33, %s34
    %p36 = scmp.eq.s32.totalorder %s35, 0
    %s38 = sadd.s32 %s37, 1
    %s39 = scalar_select %p36, %s37, %s38
    %p42 = pneg %p36
    %p43 = scmp.eq.s32.totalorder %s13, 3
    %p44 = por %p42, %p43
    %p45 = scmp.ne.s32.totalorder %s37, %s40
    %p46 = scmp.eq.s32.totalorder %s13, 0
    %p47 = por %p45, %p46
    %p48 = scmp.ne.s32.totalorder %s37, %s40
    %p49 = scmp.eq.s32.totalorder %s18, 3
    %p50 = por %p48, %p49
    %p51 = scmp.ne.s32.totalorder %s40, %s41
    %p52 = scmp.eq.s32.totalorder %s18, 0
    %p53 = por %p51, %p52
    %p54 = scmp.ne.s32.totalorder %s40, %s41
    %p55 = scmp.eq.s32.totalorder %s19, 3
    %p56 = por %p54, %p55
    %p58 = scmp.ne.s32.totalorder %s41, %s57
    %p59 = scmp.eq.s32.totalorder %s19, 0
    %p60 = por %p58, %p59
    %s62 = sadd.s32 %s61, 1
    %p65 = scmp.eq.s32.totalorder %s13, 3
    %p66 = scmp.ne.s32.totalorder %s61, %s63
    %p67 = scmp.eq.s32.totalorder %s13, 0
    %p68 = por %p66, %p67
    %p69 = scmp.ne.s32.totalorder %s61, %s63
    %p70 = scmp.eq.s32.totalorder %s18, 3
    %p71 = por %p69, %p70
    %p72 = scmp.ne.s32.totalorder %s63, %s64
    %p73 = scmp.eq.s32.totalorder %s18, 0
    %p74 = por %p72, %p73
    %p75 = scmp.ne.s32.totalorder %s63, %s64
    %p76 = scmp.eq.s32.totalorder %s19, 3
    %p77 = por %p75, %p76
    %p79 = scmp.ne.s32.totalorder %s64, %s78
    %p80 = scmp.eq.s32.totalorder %s19, 0
    %p81 = por %p79, %p80
    %s83 = sadd.s32 %s82, 1
    %p86 = scmp.eq.s32.totalorder %s13, 3
    %p87 = scmp.ne.s32.totalorder %s82, %s84
    %p88 = scmp.eq.s32.totalorder %s13, 0
    %p89 = por %p87, %p88
    %p90 = scmp.ne.s32.totalorder %s82, %s84
    %p91 = scmp.eq.s32.totalorder %s18, 3
    %p92 = por %p90, %p91
    %p93 = scmp.ne.s32.totalorder %s84, %s85
    %p94 = scmp.eq.s32.totalorder %s18, 0
    %p95 = por %p93, %p94
    %p96 = scmp.ne.s32.totalorder %s84, %s85
    %p97 = scmp.eq.s32.totalorder %s19, 3
    %p98 = por %p96, %p97
    %p100 = scmp.ne.s32.totalorder %s85, %s99
    %p101 = scmp.eq.s32.totalorder %s19, 0
    %p102 = por %p100, %p101
    %s104 = sadd.s32 %s103, 1
    %p107 = scmp.eq.s32.totalorder %s13, 3
    %p108 = scmp.ne.s32.totalorder %s103, %s105
    %p109 = scmp.eq.s32.totalorder %s13, 0
    %p110 = por %p108, %p109
    %p111 = scmp.ne.s32.totalorder %s103, %s105
    %p112 = scmp.eq.s32.totalorder %s18, 3
    %p113 = por %p111, %p112
    %p114 = scmp.ne.s32.totalorder %s105, %s106
    %p115 = scmp.eq.s32.totalorder %s18, 0
    %p116 = por %p114, %p115
    %p117 = scmp.ne.s32.totalorder %s105, %s106
    %p118 = scmp.eq.s32.totalorder %s19, 3
    %p119 = por %p117, %p118
    %p121 = scmp.ne.s32.totalorder %s106, %s120
    %p122 = scmp.eq.s32.totalorder %s19, 0
    %p123 = por %p121, %p122
    %s125 = sadd.s32 %s124, 1
    %p128 = scmp.eq.s32.totalorder %s13, 3
    %p129 = scmp.ne.s32.totalorder %s124, %s126
    %p130 = scmp.eq.s32.totalorder %s13, 0
    %p131 = por %p129, %p130
    %p132 = scmp.ne.s32.totalorder %s124, %s126
    %p133 = scmp.eq.s32.totalorder %s18, 3
    %p134 = por %p132, %p133
    %p135 = scmp.ne.s32.totalorder %s126, %s127
    %p136 = scmp.eq.s32.totalorder %s18, 0
    %p137 = por %p135, %p136
    %p138 = scmp.ne.s32.totalorder %s126, %s127
    %p139 = scmp.eq.s32.totalorder %s19, 3
    %p140 = por %p138, %p139
    %p142 = scmp.ne.s32.totalorder %s127, %s141
    %p143 = scmp.eq.s32.totalorder %s19, 0
    %p144 = por %p142, %p143
    %s146 = sadd.s32 %s145, 1
    %p149 = scmp.eq.s32.totalorder %s13, 3
    %p150 = scmp.ne.s32.totalorder %s145, %s147
    %p151 = scmp.eq.s32.totalorder %s13, 0
    %p152 = por %p150, %p151
    %p153 = scmp.ne.s32.totalorder %s145, %s147
    %p154 = scmp.eq.s32.totalorder %s18, 3
    %p155 = por %p153, %p154
    %p156 = scmp.ne.s32.totalorder %s147, %s148
    %p157 = scmp.eq.s32.totalorder %s18, 0
    %p158 = por %p156, %p157
    %p159 = scmp.ne.s32.totalorder %s147, %s148
    %p160 = scmp.eq.s32.totalorder %s19, 3
    %p161 = por %p159, %p160
    %p163 = scmp.ne.s32.totalorder %s148, %s162
    %p164 = scmp.eq.s32.totalorder %s19, 0
    %p165 = por %p163, %p164
    %s167 = sadd.s32 %s166, 1
    %p170 = scmp.eq.s32.totalorder %s13, 3
    %p171 = scmp.ne.s32.totalorder %s166, %s168
    %p172 = scmp.eq.s32.totalorder %s13, 0
    %p173 = por %p171, %p172
    %p174 = scmp.ne.s32.totalorder %s166, %s168
    %p175 = scmp.eq.s32.totalorder %s18, 3
    %p176 = por %p174, %p175
    %p177 = scmp.ne.s32.totalorder %s168, %s169
    %p178 = scmp.eq.s32.totalorder %s18, 0
    %p179 = por %p177, %p178
    %p180 = scmp.ne.s32.totalorder %s168, %s169
    %p181 = scmp.eq.s32.totalorder %s19, 3
    %p182 = por %p180, %p181
    %p184 = scmp.ne.s32.totalorder %s169, %s183
    %p185 = scmp.eq.s32.totalorder %s19, 0
    %p186 = por %p184, %p185
    %s187 = ssub.s32 %s20, %s32
    %s188 = ssub.s32 %s21, %s28
    %s189 = sor.u32 %s187, %s188
    %p190 = scmp.eq.s32.totalorder %s189, 0
    %s192 = sadd.s32 %s191, 1
    %s193 = scalar_select %p190, %s191, %s192
    %p196 = pneg %p190
    %p197 = scmp.eq.s32.totalorder %s13, 3
    %p198 = por %p196, %p197
    %p199 = scmp.ne.s32.totalorder %s191, %s194
    %p200 = scmp.eq.s32.totalorder %s13, 0
    %p201 = por %p199, %p200
    %p202 = scmp.ne.s32.totalorder %s191, %s194
    %p203 = scmp.eq.s32.totalorder %s18, 3
    %p204 = por %p202, %p203
    %p205 = scmp.ne.s32.totalorder %s194, %s195
    %p206 = scmp.eq.s32.totalorder %s18, 0
    %p207 = por %p205, %p206
    %p208 = scmp.ne.s32.totalorder %s194, %s195
    %p209 = scmp.eq.s32.totalorder %s19, 3
    %p210 = por %p208, %p209
    %p212 = scmp.ne.s32.totalorder %s195, %s211
    %p213 = scmp.eq.s32.totalorder %s19, 0
    %p214 = por %p212, %p213
    %p215 = scmp.le.s32.totalorder 1, %s13
    %p216 = scmp.lt.s32.totalorder %s13, 5
    %p217 = pnand %p215, %p216
    %p218 = pneg %p217
    // Predicated region
    $region9: #{wmsa_forward.1} parent=5 // pred_check
      _
    $region10: #{wmsa_forward.1} parent=5 // pred_check_branch
      %220 = sbr.rel (%p217) target = $region12
    $region11: #{wmsa_forward.1} parent=5 // pred_region
      %s221 = ssub.s32 %s13, 1
      // Predicated region
      $region13: #{wmsa_forward.1} parent=11 // pred_check
        %p222 = pneg %p74
      $region14: #{wmsa_forward.1} parent=11 // pred_check_branch
        %224 = sbr.rel (%p222) target = $region16
      $region15: #{wmsa_forward.1} parent=11 // pred_region
        _
      $region16: #{wmsa_forward.1} parent=11 // pred_fallthru
        _
      // Predicated region
      $region17: #{wmsa_forward.1} parent=11 // pred_check
        %p225 = pneg %p95
      $region18: #{wmsa_forward.1} parent=11 // pred_check_branch
        %227 = sbr.rel (%p225) target = $region20
      $region19: #{wmsa_forward.1} parent=11 // pred_region
        _
      $region20: #{wmsa_forward.1} parent=11 // pred_fallthru
        _
      // Predicated region
      $region21: #{wmsa_forward.1} parent=11 // pred_check
        %p228 = pneg %p116
      $region22: #{wmsa_forward.1} parent=11 // pred_check_branch
        %230 = sbr.rel (%p228) target = $region24
      $region23: #{wmsa_forward.1} parent=11 // pred_region
        _
      $region24: #{wmsa_forward.1} parent=11 // pred_fallthru
        _
      // Predicated region
      $region25: #{wmsa_forward.1} parent=11 // pred_check
        %p231 = pneg %p137
      $region26: #{wmsa_forward.1} parent=11 // pred_check_branch
        %233 = sbr.rel (%p231) target = $region28
      $region27: #{wmsa_forward.1} parent=11 // pred_region
        _
      $region28: #{wmsa_forward.1} parent=11 // pred_fallthru
        _
      // Predicated region
      $region29: #{wmsa_forward.1} parent=11 // pred_check
        %p234 = pneg %p158
      $region30: #{wmsa_forward.1} parent=11 // pred_check_branch
        %236 = sbr.rel (%p234) target = $region32
      $region31: #{wmsa_forward.1} parent=11 // pred_region
        _
      $region32: #{wmsa_forward.1} parent=11 // pred_fallthru
        _
      // Predicated region
      $region33: #{wmsa_forward.1} parent=11 // pred_check
        %p237 = pneg %p179
      $region34: #{wmsa_forward.1} parent=11 // pred_check_branch
        %239 = sbr.rel (%p237) target = $region36
      $region35: #{wmsa_forward.1} parent=11 // pred_region
        _
      $region36: #{wmsa_forward.1} parent=11 // pred_fallthru
        _
    $region12: #{wmsa_forward.1} parent=5 // pred_fallthru
      _
    %p240 = scmp.lt.s32.totalorder %s13, 4
    // Predicated region
    $region37: #{wmsa_forward.1} parent=5 // pred_check
      %p241 = pneg %p240
    $region38: #{wmsa_forward.1} parent=5 // pred_check_branch
      %243 = sbr.rel (%p241) target = $region40
    $region39: #{wmsa_forward.1} parent=5 // pred_region
      // Predicated region
      $region41: #{wmsa_forward.1} parent=39 // pred_check
        %p244 = pneg %p47
      $region42: #{wmsa_forward.1} parent=39 // pred_check_branch
        %246 = sbr.rel (%p244) target = $region44
      $region43: #{wmsa_forward.1} parent=39 // pred_region
        %s247 = smul.u32 16, %s21
        %p248 = scmp.lt.s32.totalorder %s20, 1
        %s249 = scalar_select %p248, %s20, 1
        %p250 = scmp.lt.s32.totalorder %s247, 31
        %s251 = scalar_select %p250, %s247, 31
        %s252 = smul.addr %s249, 32
        %s253 = sadd.s32 %s251, %s252
        %s254 = smul.addr %s253, 4
        %s255 = scalar_lea.vmem %s0, %s254
        %s256 = smul.u32 16, %s21
      $region44: #{wmsa_forward.1} parent=39 // pred_fallthru
        _
    $region40: #{wmsa_forward.1} parent=5 // pred_fallthru
      _
    %p257 = scmp.le.s32.totalorder 1, %s13
    %p258 = scmp.lt.s32.totalorder %s13, 5
    %p259 = pnand %p257, %p258
    %p260 = pneg %p259
    // Predicated region
    $region45: #{wmsa_forward.1} parent=5 // pred_check
      _
    $region46: #{wmsa_forward.1} parent=5 // pred_check_branch
      %262 = sbr.rel (%p259) target = $region48
    $region47: #{wmsa_forward.1} parent=5 // pred_region
      %s263 = ssub.s32 %s13, 1
      %s264 = smul.u32 16, %s23
      %p265 = scmp.lt.s32.totalorder %s22, 1
      %s266 = scalar_select %p265, %s22, 1
      %p267 = scmp.lt.s32.totalorder %s264, 31
      %s268 = scalar_select %p267, %s264, 31
      %s269 = smul.addr %s266, 32
      %s270 = sadd.s32 %s268, %s269
      %s271 = smul.addr %s270, 4
      %s272 = scalar_lea.vmem %s0, %s271
      %p273 = pneg %p53
      %p274 = pneg %p50
      %p275 = pneg %p74
      %p276 = pneg %p71
      %p277 = pneg %p95
      %p278 = pneg %p92
      %p279 = pneg %p116
      %p280 = pneg %p113
      %p281 = pneg %p137
      %p282 = pneg %p134
      %p283 = pneg %p158
      %p284 = pneg %p155
      %p285 = pneg %p179
      %p286 = pneg %p176
      %p287 = pneg %p207
      %p288 = pneg %p204
      %p289 = scmp.lt.s32.totalorder %s22, 1
      %s290 = scalar_select %p289, %s22, 1
      %p291 = scmp.lt.s32.totalorder %s23, 1
      %s292 = scalar_select %p291, %s23, 1
      %s293 = smul.addr %s292, 4
      %s294 = smul.addr %s290, 8
      %s295 = sadd.s32 %s293, %s294
      %s296 = smul.addr %s295, 8
      %s297 = scalar_lea.vmem %s7, %s296
      %s298 = smul.u32 16, %s23
      %p299 = scmp.lt.s32.totalorder %s22, 1
      %s300 = scalar_select %p299, %s22, 1
      %p301 = scmp.lt.s32.totalorder %s298, 31
      %s302 = scalar_select %p301, %s298, 31
      %s303 = smul.addr %s300, 32
      %s304 = sadd.s32 %s302, %s303
      %s305 = smul.addr %s304, 4
      %s306 = scalar_lea.vmem %s0, %s305
      %s307 = smul.u32 16, %s23
      %p308 = scmp.lt.s32.totalorder %s22, 1
      %s309 = scalar_select %p308, %s22, 1
      %p310 = scmp.lt.s32.totalorder %s23, 1
      %s311 = scalar_select %p310, %s23, 1
      %s312 = smul.addr %s311, 4
      %s313 = smul.addr %s309, 8
      %s314 = sadd.s32 %s312, %s313
      %s315 = smul.addr %s314, 8
      %s316 = scalar_lea.vmem %s7, %s315
      %v318 = vld [vmem:[%s306] sm:$0xf]
      %v319 = vld [vmem:[%s306 + $0x4] sm:$0xf]
      %v320 = vld [vmem:[%s306 + $0x8] sm:$0xf]
      %v321 = vld [vmem:[%s306 + $0xc] sm:$0xf]
      %v322 = vld [vmem:[%s306 + $0x10] sm:$0xf]
      %v323 = vld [vmem:[%s306 + $0x14] sm:$0xf]
      %v324 = vld [vmem:[%s306 + $0x18] sm:$0xf]
      %v325 = vld [vmem:[%s306 + $0x1c] sm:$0xf]
      %v326 = vld [vmem:[%s306 + $0x20] sm:$0xf]
      %v327 = vld [vmem:[%s306 + $0x24] sm:$0xf]
      %v328 = vld [vmem:[%s306 + $0x28] sm:$0xf]
      %v329 = vld [vmem:[%s306 + $0x2c] sm:$0xf]
      %v330 = vld [vmem:[%s306 + $0x30] sm:$0xf]
      %v331 = vld [vmem:[%s306 + $0x34] sm:$0xf]
      %v332 = vld [vmem:[%s306 + $0x38] sm:$0xf]
      %v333 = vld [vmem:[%s306 + $0x3c] sm:$0xf]
      %v334 = vld [vmem:[%s1] sm:$0xf]
      %v335 = vld [vmem:[%s1 + $0x4] sm:$0xf]
      %v336 = vld [vmem:[%s1 + $0x8] sm:$0xf]
      %v337 = vld [vmem:[%s1 + $0xc] sm:$0xf]
      %v338 = vld [vmem:[%s2] sm:$0x1]
      %v340 = vlaneseq
      %v341 = vshrl.u32 %v340, 7
      %v342 = vsub.s32 0, %v341
      %v343 = vrot.slane %v338, %v342
      %v361 = vunpack.c.l.b16 %v318
      %v362 = vunpack.c.l.b16 %v319
      %v363 = vunpack.c.l.b16 %v320
      %v364 = vunpack.c.l.b16 %v321
      %v365 = vunpack.c.l.b16 %v322
      %v366 = vunpack.c.l.b16 %v323
      %v367 = vunpack.c.l.b16 %v324
      %v368 = vunpack.c.l.b16 %v325
      %v369 = vunpack.c.l.b16 %v326
      %v370 = vunpack.c.l.b16 %v327
      %v371 = vunpack.c.l.b16 %v328
      %v372 = vunpack.c.l.b16 %v329
      %v373 = vunpack.c.l.b16 %v330
      %v374 = vunpack.c.l.b16 %v331
      %v375 = vunpack.c.l.b16 %v332
      %v376 = vunpack.c.l.b16 %v333
      %v377 = vpack.c.b16 %v362, %v361
      %v378 = vpack.c.b16 %v364, %v363
      %v379 = vpack.c.b16 %v366, %v365
      %v380 = vpack.c.b16 %v368, %v367
      %v381 = vpack.c.b16 %v370, %v369
      %v382 = vpack.c.b16 %v372, %v371
      %v383 = vpack.c.b16 %v374, %v373
      %v384 = vpack.c.b16 %v376, %v375
      %v389 = vunpack.c.l.b16 %v334
      %v390 = vunpack.c.l.b16 %v335
      %v391 = vunpack.c.l.b16 %v336
      %v392 = vunpack.c.l.b16 %v337
      %v393 = vpack.c.b16 %v390, %v389
      %v394 = vpack.c.b16 %v392, %v391
      %vm397 = vcmask 261120
      %v399 = vsel %vm397, %v377, 0
      %v402 = vsel %vm397, %v378, 0
      %v405 = vsel %vm397, %v379, 0
      %v408 = vsel %vm397, %v380, 0
      %v411 = vsel %vm397, %v381, 0
      %v414 = vsel %vm397, %v382, 0
      %v417 = vsel %vm397, %v383, 0
      %v420 = vsel %vm397, %v384, 0
      %422 = vmatprep.subr.bf16.mxu0 0
      %423 = vmatpush1.bf16.msra.mxu0 %v393
      %424 = vmatprep.subr.bf16.mxu0 0
      %425 = vmatpush1.bf16.msra.mxu0 %v394
      %426 = vmatprep.subr.bf16.mxu0 0
      %427 = vmatpush1.bf16.msra.mxu0 0
      %428 = vmatprep.subr.bf16.mxu0 0
      %429 = vmatpush1.bf16.msra.mxu0 0
      %430 = vmatprep.subr.bf16.mxu0 0
      %431 = vmatpush1.bf16.msra.mxu0 0
      %432 = vmatprep.subr.bf16.mxu0 0
      %433 = vmatpush1.bf16.msra.mxu0 0
      %434 = vmatprep.subr.bf16.mxu0 0
      %435 = vmatpush1.bf16.msra.mxu0 0
      %436 = vmatprep.subr.bf16.mxu0 0
      %437 = vmatpush1.bf16.msra.mxu0 0
      %438 = vmatprep.subr.bf16.mxu0 0
      %439 = vmatpush1.bf16.msra.mxu0 0
      %440 = vmatprep.subr.bf16.mxu0 0
      %441 = vmatpush1.bf16.msra.mxu0 0
      %442 = vmatprep.subr.bf16.mxu0 0
      %443 = vmatpush1.bf16.msra.mxu0 0
      %444 = vmatprep.subr.bf16.mxu0 0
      %445 = vmatpush1.bf16.msra.mxu0 0
      %446 = vmatprep.subr.bf16.mxu0 0
      %447 = vmatpush1.bf16.msra.mxu0 0
      %448 = vmatprep.subr.bf16.mxu0 0
      %449 = vmatpush1.bf16.msra.mxu0 0
      %450 = vmatprep.subr.bf16.mxu0 0
      %451 = vmatpush1.bf16.msra.mxu0 0
      %452 = vmatprep.subr.bf16.mxu0 0
      %453 = vmatpush1.bf16.msra.mxu0 0
      %454 = vmatprep.mubr.bf16.mxu0 0
      %455 = vmatmul.mubr.bf16.gmra.mrb[0].mxu0 %v399
      %v456 = vpop.f32.mrb[0].mxu0
      %v457 = vadd.f32 %v343, %v456
      %v458 = vpop.f32.mrb[0].mxu0
      %v459 = vpop.f32.mrb[0].mxu0
      %v460 = vadd.f32 %v343, %v459
      %v461 = vpop.f32.mrb[0].mxu0
      %462 = vmatprep.mubr.bf16.mxu0 0
      %463 = vmatmul.mubr.bf16.gmra.mrb[0].mxu0 %v402
      %v464 = vpop.f32.mrb[0].mxu0
      %v465 = vadd.f32 %v343, %v464
      %v466 = vpop.f32.mrb[0].mxu0
      %v467 = vpop.f32.mrb[0].mxu0
      %v468 = vadd.f32 %v343, %v467
      %v469 = vpop.f32.mrb[0].mxu0
      %470 = vmatprep.mubr.bf16.mxu0 0
      %471 = vmatmul.mubr.bf16.gmra.mrb[0].mxu0 %v405
      %v472 = vpop.f32.mrb[0].mxu0
      %v473 = vadd.f32 %v343, %v472
      %v474 = vpop.f32.mrb[0].mxu0
      %v475 = vpop.f32.mrb[0].mxu0
      %v476 = vadd.f32 %v343, %v475
      %v477 = vpop.f32.mrb[0].mxu0
      %478 = vmatprep.mubr.bf16.mxu0 0
      %479 = vmatmul.mubr.bf16.gmra.mrb[0].mxu0 %v408
      %v480 = vpop.f32.mrb[0].mxu0
      %v481 = vadd.f32 %v343, %v480
      %v482 = vpop.f32.mrb[0].mxu0
      %v483 = vpop.f32.mrb[0].mxu0
      %v484 = vadd.f32 %v343, %v483
      %v485 = vpop.f32.mrb[0].mxu0
      %486 = vmatprep.mubr.bf16.mxu0 0
      %487 = vmatmul.mubr.bf16.gmra.mrb[0].mxu0 %v411
      %v488 = vpop.f32.mrb[0].mxu0
      %v489 = vadd.f32 %v343, %v488
      %v490 = vpop.f32.mrb[0].mxu0
      %v491 = vpop.f32.mrb[0].mxu0
      %v492 = vadd.f32 %v343, %v491
      %v493 = vpop.f32.mrb[0].mxu0
      %494 = vmatprep.mubr.bf16.mxu0 0
      %495 = vmatmul.mubr.bf16.gmra.mrb[0].mxu0 %v414
      %v496 = vpop.f32.mrb[0].mxu0
      %v497 = vadd.f32 %v343, %v496
      %v498 = vpop.f32.mrb[0].mxu0
      %v499 = vpop.f32.mrb[0].mxu0
      %v500 = vadd.f32 %v343, %v499
      %v501 = vpop.f32.mrb[0].mxu0
      %502 = vmatprep.mubr.bf16.mxu0 0
      %503 = vmatmul.mubr.bf16.gmra.mrb[0].mxu0 %v417
      %v504 = vpop.f32.mrb[0].mxu0
      %v505 = vadd.f32 %v343, %v504
      %v506 = vpop.f32.mrb[0].mxu0
      %v507 = vpop.f32.mrb[0].mxu0
      %v508 = vadd.f32 %v343, %v507
      %v509 = vpop.f32.mrb[0].mxu0
      %510 = vmatprep.mubr.bf16.mxu0 0
      %511 = vmatmul.mubr.bf16.gmra.mrb[0].mxu0 %v420
      %v512 = vpop.f32.mrb[0].mxu0
      %v513 = vadd.f32 %v343, %v512
      %v514 = vpop.f32.mrb[0].mxu0
      %v515 = vpop.f32.mrb[0].mxu0
      %v516 = vadd.f32 %v343, %v515
      %v517 = vpop.f32.mrb[0].mxu0
      %518 = vdwg.mxu0
      %v519 = vpack.c.bf16 %v460, %v457
      %v520 = vpack.c.bf16 %v468, %v465
      %v521 = vpack.c.bf16 %v476, %v473
      %v522 = vpack.c.bf16 %v484, %v481
      %v523 = vpack.c.bf16 %v492, %v489
      %v524 = vpack.c.bf16 %v500, %v497
      %v525 = vpack.c.bf16 %v508, %v505
      %v526 = vpack.c.bf16 %v516, %v513
      %v527 = vld [vmem:[%s4] sm:$0x1]
      %v528 = vld [vmem:[%s4 + $0x1] sm:$0x1]
      %v529 = vld [vmem:[%s4 + $0x2] sm:$0x1]
      %v530 = vld [vmem:[%s4 + $0x3] sm:$0x1]
      %v531 = vpack.c.bf16 %v527, %v527
      %v532 = vpack.c.bf16 %v528, %v528
      %v533 = vpack.c.bf16 %v529, %v529
      %v534 = vpack.c.bf16 %v530, %v530
      %v536 = vpack.i.b16 %v531, %v531
      %v538 = vlaneseq
      %v539 = vshrl.u32 %v538, 7
      %v540 = vsub.s32 0, %v539
      %v541 = vrot.slane %v536, %v540
      %v543 = vpack.i.b16 %v532, %v532
      %v545 = vlaneseq
      %v546 = vshrl.u32 %v545, 7
      %v547 = vsub.s32 0, %v546
      %v548 = vrot.slane %v543, %v547
      %v550 = vpack.i.b16 %v533, %v533
      %v552 = vlaneseq
      %v553 = vshrl.u32 %v552, 7
      %v554 = vsub.s32 0, %v553
      %v555 = vrot.slane %v550, %v554
      %v557 = vpack.i.b16 %v534, %v534
      %v559 = vlaneseq
      %v560 = vshrl.u32 %v559, 7
      %v561 = vsub.s32 0, %v560
      %v562 = vrot.slane %v557, %v561
      %v563 = vmul.bf16 %v519, %v541
      %v564 = vmul.bf16 %v519, %v548
      %v565 = vmul.bf16 %v519, %v555
      %v566 = vmul.bf16 %v519, %v562
      %v567 = vmul.bf16 %v520, %v541
      %v568 = vmul.bf16 %v520, %v548
      %v569 = vmul.bf16 %v520, %v555
      %v570 = vmul.bf16 %v520, %v562
      %v571 = vmul.bf16 %v521, %v541
      %v572 = vmul.bf16 %v521, %v548
      %v573 = vmul.bf16 %v521, %v555
      %v574 = vmul.bf16 %v521, %v562
      %v575 = vmul.bf16 %v522, %v541
      %v576 = vmul.bf16 %v522, %v548
      %v577 = vmul.bf16 %v522, %v555
      %v578 = vmul.bf16 %v522, %v562
      %v579 = vmul.bf16 %v523, %v541
      %v580 = vmul.bf16 %v523, %v548
      %v581 = vmul.bf16 %v523, %v555
      %v582 = vmul.bf16 %v523, %v562
      %v583 = vmul.bf16 %v524, %v541
      %v584 = vmul.bf16 %v524, %v548
      %v585 = vmul.bf16 %v524, %v555
      %v586 = vmul.bf16 %v524, %v562
      %v587 = vmul.bf16 %v525, %v541
      %v588 = vmul.bf16 %v525, %v548
      %v589 = vmul.bf16 %v525, %v555
      %v590 = vmul.bf16 %v525, %v562
      %v591 = vmul.bf16 %v526, %v541
      %v592 = vmul.bf16 %v526, %v548
      %v593 = vmul.bf16 %v526, %v555
      %v594 = vmul.bf16 %v526, %v562
      %596 = vrot.lane.b32.xlu0 %v519, 96
      %v597 = vpop.permute.xlu0 %596
      %v599 = vsel %vm397, %v563, 0
      %v602 = vsel %vm397, %v564, 0
      %v605 = vsel %vm397, %v565, 0
      %v608 = vsel %vm397, %v566, 0
      %v611 = vsel %vm397, %v597, 0
      %613 = vmatprep.subr.bf16.mxu0 0
      %614 = vmatpush1.bf16.xpose.msra.mxu0 %v611
      %615 = vmatprep.subr.bf16.mxu0 0
      %616 = vmatpush1.bf16.xpose.msra.mxu0 0
      %617 = vmatprep.subr.bf16.mxu0 0
      %618 = vmatpush1.bf16.xpose.msra.mxu0 0
      %619 = vmatprep.subr.bf16.mxu0 0
      %620 = vmatpush1.bf16.xpose.msra.mxu0 0
      %621 = vmatprep.subr.bf16.mxu0 0
      %622 = vmatpush1.bf16.xpose.msra.mxu0 0
      %623 = vmatprep.subr.bf16.mxu0 0
      %624 = vmatpush1.bf16.xpose.msra.mxu0 0
      %625 = vmatprep.subr.bf16.mxu0 0
      %626 = vmatpush1.bf16.xpose.msra.mxu0 0
      %627 = vmatprep.subr.bf16.mxu0 0
      %628 = vmatpush1.bf16.xpose.msra.mxu0 0
      %629 = vmatprep.subr.bf16.mxu0 0
      %630 = vmatpush1.bf16.xpose.msra.mxu0 0
      %631 = vmatprep.subr.bf16.mxu0 0
      %632 = vmatpush1.bf16.xpose.msra.mxu0 0
      %633 = vmatprep.subr.bf16.mxu0 0
      %634 = vmatpush1.bf16.xpose.msra.mxu0 0
      %635 = vmatprep.subr.bf16.mxu0 0
      %636 = vmatpush1.bf16.xpose.msra.mxu0 0
      %637 = vmatprep.subr.bf16.mxu0 0
      %638 = vmatpush1.bf16.xpose.msra.mxu0 0
      %639 = vmatprep.subr.bf16.mxu0 0
      %640 = vmatpush1.bf16.xpose.msra.mxu0 0
      %641 = vmatprep.subr.bf16.mxu0 0
      %642 = vmatpush1.bf16.xpose.msra.mxu0 0
      %643 = vmatprep.subr.bf16.mxu0 0
      %644 = vmatpush1.bf16.xpose.msra.mxu0 0
      %645 = vmatprep.mubr.bf16.mxu0 0
      %646 = vmatmul.mubr.bf16.gmra.mrb[0].mxu0 %v599
      %v647 = vpop.f32.mrb[0].mxu0
      %v648 = vadd.f32 0.0, %v647
      %v649 = vpop.f32.mrb[0].mxu0
      %v650 = vpop.f32.mrb[0].mxu0
      %v651 = vadd.f32 0.0, %v650
      %v652 = vpop.f32.mrb[0].mxu0
      %653 = vmatprep.mubr.bf16.mxu0 0
      %654 = vmatmul.mubr.bf16.gmra.mrb[0].mxu0 %v602
      %v655 = vpop.f32.mrb[0].mxu0
      %v656 = vadd.f32 0.0, %v655
      %v657 = vpop.f32.mrb[0].mxu0
      %v658 = vpop.f32.mrb[0].mxu0
      %v659 = vadd.f32 0.0, %v658
      %v660 = vpop.f32.mrb[0].mxu0
      %661 = vmatprep.mubr.bf16.mxu0 0
      %662 = vmatmul.mubr.bf16.gmra.mrb[0].mxu0 %v605
      %v663 = vpop.f32.mrb[0].mxu0
      %v664 = vadd.f32 0.0, %v663
      %v665 = vpop.f32.mrb[0].mxu0
      %v666 = vpop.f32.mrb[0].mxu0
      %v667 = vadd.f32 0.0, %v666
      %v668 = vpop.f32.mrb[0].mxu0
      %669 = vmatprep.mubr.bf16.mxu0 0
      %670 = vmatmul.mubr.bf16.gmra.mrb[0].mxu0 %v608
      %v671 = vpop.f32.mrb[0].mxu0
      %v672 = vadd.f32 0.0, %v671
      %v673 = vpop.f32.mrb[0].mxu0
      %v674 = vpop.f32.mrb[0].mxu0
      %v675 = vadd.f32 0.0, %v674
      %v676 = vpop.f32.mrb[0].mxu0
      %677 = vdwg.mxu0
      %679 = vrot.lane.b32.xlu0 %v520, 96
      %v680 = vpop.permute.xlu0 %679
      %v682 = vsel %vm397, %v567, 0
      %v685 = vsel %vm397, %v568, 0
      %v688 = vsel %vm397, %v569, 0
      %v691 = vsel %vm397, %v570, 0
      %v694 = vsel %vm397, %v680, 0
      %696 = vmatprep.subr.bf16.mxu0 0
      %697 = vmatpush1.bf16.xpose.msra.mxu0 %v694
      %698 = vmatprep.subr.bf16.mxu0 0
      %699 = vmatpush1.bf16.xpose.msra.mxu0 0
      %700 = vmatprep.subr.bf16.mxu0 0
      %701 = vmatpush1.bf16.xpose.msra.mxu0 0
      %702 = vmatprep.subr.bf16.mxu0 0
      %703 = vmatpush1.bf16.xpose.msra.mxu0 0
      %704 = vmatprep.subr.bf16.mxu0 0
      %705 = vmatpush1.bf16.xpose.msra.mxu0 0
      %706 = vmatprep.subr.bf16.mxu0 0
      %707 = vmatpush1.bf16.xpose.msra.mxu0 0
      %708 = vmatprep.subr.bf16.mxu0 0
      %709 = vmatpush1.bf16.xpose.msra.mxu0 0
      %710 = vmatprep.subr.bf16.mxu0 0
      %711 = vmatpush1.bf16.xpose.msra.mxu0 0
      %712 = vmatprep.subr.bf16.mxu0 0
      %713 = vmatpush1.bf16.xpose.msra.mxu0 0
      %714 = vmatprep.subr.bf16.mxu0 0
      %715 = vmatpush1.bf16.xpose.msra.mxu0 0
      %716 = vmatprep.subr.bf16.mxu0 0
      %717 = vmatpush1.bf16.xpose.msra.mxu0 0
      %718 = vmatprep.subr.bf16.mxu0 0
      %719 = vmatpush1.bf16.xpose.msra.mxu0 0
      %720 = vmatprep.subr.bf16.mxu0 0
      %721 = vmatpush1.bf16.xpose.msra.mxu0 0
      %722 = vmatprep.subr.bf16.mxu0 0
      %723 = vmatpush1.bf16.xpose.msra.mxu0 0
      %724 = vmatprep.subr.bf16.mxu0 0
      %725 = vmatpush1.bf16.xpose.msra.mxu0 0
      %726 = vmatprep.subr.bf16.mxu0 0
      %727 = vmatpush1.bf16.xpose.msra.mxu0 0
      %728 = vmatprep.mubr.bf16.mxu0 0
      %729 = vmatmul.mubr.bf16.gmra.mrb[0].mxu0 %v682
      %v730 = vpop.f32.mrb[0].mxu0
      %v731 = vadd.f32 0.0, %v730
      %v732 = vpop.f32.mrb[0].mxu0
      %v733 = vpop.f32.mrb[0].mxu0
      %v734 = vadd.f32 0.0, %v733
      %v735 = vpop.f32.mrb[0].mxu0
      %736 = vmatprep.mubr.bf16.mxu0 0
      %737 = vmatmul.mubr.bf16.gmra.mrb[0].mxu0 %v685
      %v738 = vpop.f32.mrb[0].mxu0
      %v739 = vadd.f32 0.0, %v738
      %v740 = vpop.f32.mrb[0].mxu0
      %v741 = vpop.f32.mrb[0].mxu0
      %v742 = vadd.f32 0.0, %v741
      %v743 = vpop.f32.mrb[0].mxu0
      %744 = vmatprep.mubr.bf16.mxu0 0
      %745 = vmatmul.mubr.bf16.gmra.mrb[0].mxu0 %v688
      %v746 = vpop.f32.mrb[0].mxu0
      %v747 = vadd.f32 0.0, %v746
      %v748 = vpop.f32.mrb[0].mxu0
      %v749 = vpop.f32.mrb[0].mxu0
      %v750 = vadd.f32 0.0, %v749
      %v751 = vpop.f32.mrb[0].mxu0
      %752 = vmatprep.mubr.bf16.mxu0 0
      %753 = vmatmul.mubr.bf16.gmra.mrb[0].mxu0 %v691
      %v754 = vpop.f32.mrb[0].mxu0
      %v755 = vadd.f32 0.0, %v754
      %v756 = vpop.f32.mrb[0].mxu0
      %v757 = vpop.f32.mrb[0].mxu0
      %v758 = vadd.f32 0.0, %v757
      %v759 = vpop.f32.mrb[0].mxu0
      %760 = vdwg.mxu0
      %762 = vrot.lane.b32.xlu0 %v521, 96
      %v763 = vpop.permute.xlu0 %762
      %v765 = vsel %vm397, %v571, 0
      %v768 = vsel %vm397, %v572, 0
      %v771 = vsel %vm397, %v573, 0
      %v774 = vsel %vm397, %v574, 0
      %v777 = vsel %vm397, %v763, 0
      %779 = vmatprep.subr.bf16.mxu0 0
      %780 = vmatpush1.bf16.xpose.msra.mxu0 %v777
      %781 = vmatprep.subr.bf16.mxu0 0
      %782 = vmatpush1.bf16.xpose.msra.mxu0 0
      %783 = vmatprep.subr.bf16.mxu0 0
      %784 = vmatpush1.bf16.xpose.msra.mxu0 0
      %785 = vmatprep.subr.bf16.mxu0 0
      %786 = vmatpush1.bf16.xpose.msra.mxu0 0
      %787 = vmatprep.subr.bf16.mxu0 0
      %788 = vmatpush1.bf16.xpose.msra.mxu0 0
      %789 = vmatprep.subr.bf16.mxu0 0
      %790 = vmatpush1.bf16.xpose.msra.mxu0 0
      %791 = vmatprep.subr.bf16.mxu0 0
      %792 = vmatpush1.bf16.xpose.msra.mxu0 0
      %793 = vmatprep.subr.bf16.mxu0 0
      %794 = vmatpush1.bf16.xpose.msra.mxu0 0
      %795 = vmatprep.subr.bf16.mxu0 0
      %796 = vmatpush1.bf16.xpose.msra.mxu0 0
      %797 = vmatprep.subr.bf16.mxu0 0
      %798 = vmatpush1.bf16.xpose.msra.mxu0 0
      %799 = vmatprep.subr.bf16.mxu0 0
      %800 = vmatpush1.bf16.xpose.msra.mxu0 0
      %801 = vmatprep.subr.bf16.mxu0 0
      %802 = vmatpush1.bf16.xpose.msra.mxu0 0
      %803 = vmatprep.subr.bf16.mxu0 0
      %804 = vmatpush1.bf16.xpose.msra.mxu0 0
      %805 = vmatprep.subr.bf16.mxu0 0
      %806 = vmatpush1.bf16.xpose.msra.mxu0 0
      %807 = vmatprep.subr.bf16.mxu0 0
      %808 = vmatpush1.bf16.xpose.msra.mxu0 0
      %809 = vmatprep.subr.bf16.mxu0 0
      %810 = vmatpush1.bf16.xpose.msra.mxu0 0
      %811 = vmatprep.mubr.bf16.mxu0 0
      %812 = vmatmul.mubr.bf16.gmra.mrb[0].mxu0 %v765
      %v813 = vpop.f32.mrb[0].mxu0
      %v814 = vadd.f32 0.0, %v813
      %v815 = vpop.f32.mrb[0].mxu0
      %v816 = vpop.f32.mrb[0].mxu0
      %v817 = vadd.f32 0.0, %v816
      %v818 = vpop.f32.mrb[0].mxu0
      %819 = vmatprep.mubr.bf16.mxu0 0
      %820 = vmatmul.mubr.bf16.gmra.mrb[0].mxu0 %v768
      %v821 = vpop.f32.mrb[0].mxu0
      %v822 = vadd.f32 0.0, %v821
      %v823 = vpop.f32.mrb[0].mxu0
      %v824 = vpop.f32.mrb[0].mxu0
      %v825 = vadd.f32 0.0, %v824
      %v826 = vpop.f32.mrb[0].mxu0
      %827 = vmatprep.mubr.bf16.mxu0 0
      %828 = vmatmul.mubr.bf16.gmra.mrb[0].mxu0 %v771
      %v829 = vpop.f32.mrb[0].mxu0
      %v830 = vadd.f32 0.0, %v829
      %v831 = vpop.f32.mrb[0].mxu0
      %v832 = vpop.f32.mrb[0].mxu0
      %v833 = vadd.f32 0.0, %v832
      %v834 = vpop.f32.mrb[0].mxu0
      %835 = vmatprep.mubr.bf16.mxu0 0
      %836 = vmatmul.mubr.bf16.gmra.mrb[0].mxu0 %v774
      %v837 = vpop.f32.mrb[0].mxu0
      %v838 = vadd.f32 0.0, %v837
      %v839 = vpop.f32.mrb[0].mxu0
      %v840 = vpop.f32.mrb[0].mxu0
      %v841 = vadd.f32 0.0, %v840
      %v842 = vpop.f32.mrb[0].mxu0
      %843 = vdwg.mxu0
      %845 = vrot.lane.b32.xlu0 %v522, 96
      %v846 = vpop.permute.xlu0 %845
      %v848 = vsel %vm397, %v575, 0
      %v851 = vsel %vm397, %v576, 0
      %v854 = vsel %vm397, %v577, 0
      %v857 = vsel %vm397, %v578, 0
      %v860 = vsel %vm397, %v846, 0
      %862 = vmatprep.subr.bf16.mxu0 0
      %863 = vmatpush1.bf16.xpose.msra.mxu0 %v860
      %864 = vmatprep.subr.bf16.mxu0 0
      %865 = vmatpush1.bf16.xpose.msra.mxu0 0
      %866 = vmatprep.subr.bf16.mxu0 0
      %867 = vmatpush1.bf16.xpose.msra.mxu0 0
      %868 = vmatprep.subr.bf16.mxu0 0
      %869 = vmatpush1.bf16.xpose.msra.mxu0 0
      %870 = vmatprep.subr.bf16.mxu0 0
      %871 = vmatpush1.bf16.xpose.msra.mxu0 0
      %872 = vmatprep.subr.bf16.mxu0 0
      %873 = vmatpush1.bf16.xpose.msra.mxu0 0
      %874 = vmatprep.subr.bf16.mxu0 0
      %875 = vmatpush1.bf16.xpose.msra.mxu0 0
      %876 = vmatprep.subr.bf16.mxu0 0
      %877 = vmatpush1.bf16.xpose.msra.mxu0 0
      %878 = vmatprep.subr.bf16.mxu0 0
      %879 = vmatpush1.bf16.xpose.msra.mxu0 0
      %880 = vmatprep.subr.bf16.mxu0 0
      %881 = vmatpush1.bf16.xpose.msra.mxu0 0
      %882 = vmatprep.subr.bf16.mxu0 0
      %883 = vmatpush1.bf16.xpose.msra.mxu0 0
      %884 = vmatprep.subr.bf16.mxu0 0
      %885 = vmatpush1.bf16.xpose.msra.mxu0 0
      %886 = vmatprep.subr.bf16.mxu0 0
      %887 = vmatpush1.bf16.xpose.msra.mxu0 0
      %888 = vmatprep.subr.bf16.mxu0 0
      %889 = vmatpush1.bf16.xpose.msra.mxu0 0
      %890 = vmatprep.subr.bf16.mxu0 0
      %891 = vmatpush1.bf16.xpose.msra.mxu0 0
      %892 = vmatprep.subr.bf16.mxu0 0
      %893 = vmatpush1.bf16.xpose.msra.mxu0 0
      %894 = vmatprep.mubr.bf16.mxu0 0
      %895 = vmatmul.mubr.bf16.gmra.mrb[0].mxu0 %v848
      %v896 = vpop.f32.mrb[0].mxu0
      %v897 = vadd.f32 0.0, %v896
      %v898 = vpop.f32.mrb[0].mxu0
      %v899 = vpop.f32.mrb[0].mxu0
      %v900 = vadd.f32 0.0, %v899
      %v901 = vpop.f32.mrb[0].mxu0
      %902 = vmatprep.mubr.bf16.mxu0 0
      %903 = vmatmul.mubr.bf16.gmra.mrb[0].mxu0 %v851
      %v904 = vpop.f32.mrb[0].mxu0
      %v905 = vadd.f32 0.0, %v904
      %v906 = vpop.f32.mrb[0].mxu0
      %v907 = vpop.f32.mrb[0].mxu0
      %v908 = vadd.f32 0.0, %v907
      %v909 = vpop.f32.mrb[0].mxu0
      %910 = vmatprep.mubr.bf16.mxu0 0
      %911 = vmatmul.mubr.bf16.gmra.mrb[0].mxu0 %v854
      %v912 = vpop.f32.mrb[0].mxu0
      %v913 = vadd.f32 0.0, %v912
      %v914 = vpop.f32.mrb[0].mxu0
      %v915 = vpop.f32.mrb[0].mxu0
      %v916 = vadd.f32 0.0, %v915
      %v917 = vpop.f32.mrb[0].mxu0
      %918 = vmatprep.mubr.bf16.mxu0 0
      %919 = vmatmul.mubr.bf16.gmra.mrb[0].mxu0 %v857
      %v920 = vpop.f32.mrb[0].mxu0
      %v921 = vadd.f32 0.0, %v920
      %v922 = vpop.f32.mrb[0].mxu0
      %v923 = vpop.f32.mrb[0].mxu0
      %v924 = vadd.f32 0.0, %v923
      %v925 = vpop.f32.mrb[0].mxu0
      %926 = vdwg.mxu0
      %928 = vrot.lane.b32.xlu0 %v523, 96
      %v929 = vpop.permute.xlu0 %928
      %v931 = vsel %vm397, %v579, 0
      %v934 = vsel %vm397, %v580, 0
      %v937 = vsel %vm397, %v581, 0
      %v940 = vsel %vm397, %v582, 0
      %v943 = vsel %vm397, %v929, 0
      %945 = vmatprep.subr.bf16.mxu0 0
      %946 = vmatpush1.bf16.xpose.msra.mxu0 %v943
      %947 = vmatprep.subr.bf16.mxu0 0
      %948 = vmatpush1.bf16.xpose.msra.mxu0 0
      %949 = vmatprep.subr.bf16.mxu0 0
      %950 = vmatpush1.bf16.xpose.msra.mxu0 0
      %951 = vmatprep.subr.bf16.mxu0 0
      %952 = vmatpush1.bf16.xpose.msra.mxu0 0
      %953 = vmatprep.subr.bf16.mxu0 0
      %954 = vmatpush1.bf16.xpose.msra.mxu0 0
      %955 = vmatprep.subr.bf16.mxu0 0
      %956 = vmatpush1.bf16.xpose.msra.mxu0 0
      %957 = vmatprep.subr.bf16.mxu0 0
      %958 = vmatpush1.bf16.xpose.msra.mxu0 0
      %959 = vmatprep.subr.bf16.mxu0 0
      %960 = vmatpush1.bf16.xpose.msra.mxu0 0
      %961 = vmatprep.subr.bf16.mxu0 0
      %962 = vmatpush1.bf16.xpose.msra.mxu0 0
      %963 = vmatprep.subr.bf16.mxu0 0
      %964 = vmatpush1.bf16.xpose.msra.mxu0 0
      %965 = vmatprep.subr.bf16.mxu0 0
      %966 = vmatpush1.bf16.xpose.msra.mxu0 0
      %967 = vmatprep.subr.bf16.mxu0 0
      %968 = vmatpush1.bf16.xpose.msra.mxu0 0
      %969 = vmatprep.subr.bf16.mxu0 0
      %970 = vmatpush1.bf16.xpose.msra.mxu0 0
      %971 = vmatprep.subr.bf16.mxu0 0
      %972 = vmatpush1.bf16.xpose.msra.mxu0 0
      %973 = vmatprep.subr.bf16.mxu0 0
      %974 = vmatpush1.bf16.xpose.msra.mxu0 0
      %975 = vmatprep.subr.bf16.mxu0 0
      %976 = vmatpush1.bf16.xpose.msra.mxu0 0
      %977 = vmatprep.mubr.bf16.mxu0 0
      %978 = vmatmul.mubr.bf16.gmra.mrb[0].mxu0 %v931
      %v979 = vpop.f32.mrb[0].mxu0
      %v980 = vadd.f32 0.0, %v979
      %v981 = vpop.f32.mrb[0].mxu0
      %v982 = vpop.f32.mrb[0].mxu0
      %v983 = vadd.f32 0.0, %v982
      %v984 = vpop.f32.mrb[0].mxu0
      %985 = vmatprep.mubr.bf16.mxu0 0
      %986 = vmatmul.mubr.bf16.gmra.mrb[0].mxu0 %v934
      %v987 = vpop.f32.mrb[0].mxu0
      %v988 = vadd.f32 0.0, %v987
      %v989 = vpop.f32.mrb[0].mxu0
      %v990 = vpop.f32.mrb[0].mxu0
      %v991 = vadd.f32 0.0, %v990
      %v992 = vpop.f32.mrb[0].mxu0
      %993 = vmatprep.mubr.bf16.mxu0 0
      %994 = vmatmul.mubr.bf16.gmra.mrb[0].mxu0 %v937
      %v995 = vpop.f32.mrb[0].mxu0
      %v996 = vadd.f32 0.0, %v995
      %v997 = vpop.f32.mrb[0].mxu0
      %v998 = vpop.f32.mrb[0].mxu0
      %v999 = vadd.f32 0.0, %v998
      %v1000 = vpop.f32.mrb[0].mxu0
      %1001 = vmatprep.mubr.bf16.mxu0 0
      %1002 = vmatmul.mubr.bf16.gmra.mrb[0].mxu0 %v940
      %v1003 = vpop.f32.mrb[0].mxu0
      %v1004 = vadd.f32 0.0, %v1003
      %v1005 = vpop.f32.mrb[0].mxu0
      %v1006 = vpop.f32.mrb[0].mxu0
      %v1007 = vadd.f32 0.0, %v1006
      %v1008 = vpop.f32.mrb[0].mxu0
      %1009 = vdwg.mxu0
      %1011 = vrot.lane.b32.xlu0 %v524, 96
      %v1012 = vpop.permute.xlu0 %1011
      %v1014 = vsel %vm397, %v583, 0
      %v1017 = vsel %vm397, %v584, 0
      %v1020 = vsel %vm397, %v585, 0
      %v1023 = vsel %vm397, %v586, 0
      %v1026 = vsel %vm397, %v1012, 0
      %1028 = vmatprep.subr.bf16.mxu0 0
      %1029 = vmatpush1.bf16.xpose.msra.mxu0 %v1026
      %1030 = vmatprep.subr.bf16.mxu0 0
      %1031 = vmatpush1.bf16.xpose.msra.mxu0 0
      %1032 = vmatprep.subr.bf16.mxu0 0
      %1033 = vmatpush1.bf16.xpose.msra.mxu0 0
      %1034 = vmatprep.subr.bf16.mxu0 0
      %1035 = vmatpush1.bf16.xpose.msra.mxu0 0
      %1036 = vmatprep.subr.bf16.mxu0 0
      %1037 = vmatpush1.bf16.xpose.msra.mxu0 0
      %1038 = vmatprep.subr.bf16.mxu0 0
      %1039 = vmatpush1.bf16.xpose.msra.mxu0 0
      %1040 = vmatprep.subr.bf16.mxu0 0
      %1041 = vmatpush1.bf16.xpose.msra.mxu0 0
      %1042 = vmatprep.subr.bf16.mxu0 0
      %1043 = vmatpush1.bf16.xpose.msra.mxu0 0
      %1044 = vmatprep.subr.bf16.mxu0 0
      %1045 = vmatpush1.bf16.xpose.msra.mxu0 0
      %1046 = vmatprep.subr.bf16.mxu0 0
      %1047 = vmatpush1.bf16.xpose.msra.mxu0 0
      %1048 = vmatprep.subr.bf16.mxu0 0
      %1049 = vmatpush1.bf16.xpose.msra.mxu0 0
      %1050 = vmatprep.subr.bf16.mxu0 0
      %1051 = vmatpush1.bf16.xpose.msra.mxu0 0
      %1052 = vmatprep.subr.bf16.mxu0 0
      %1053 = vmatpush1.bf16.xpose.msra.mxu0 0
      %1054 = vmatprep.subr.bf16.mxu0 0
      %1055 = vmatpush1.bf16.xpose.msra.mxu0 0
      %1056 = vmatprep.subr.bf16.mxu0 0
      %1057 = vmatpush1.bf16.xpose.msra.mxu0 0
      %1058 = vmatprep.subr.bf16.mxu0 0
      %1059 = vmatpush1.bf16.xpose.msra.mxu0 0
      %1060 = vmatprep.mubr.bf16.mxu0 0
      %1061 = vmatmul.mubr.bf16.gmra.mrb[0].mxu0 %v1014
      %v1062 = vpop.f32.mrb[0].mxu0
      %v1063 = vadd.f32 0.0, %v1062
      %v1064 = vpop.f32.mrb[0].mxu0
      %v1065 = vpop.f32.mrb[0].mxu0
      %v1066 = vadd.f32 0.0, %v1065
      %v1067 = vpop.f32.mrb[0].mxu0
      %1068 = vmatprep.mubr.bf16.mxu0 0
      %1069 = vmatmul.mubr.bf16.gmra.mrb[0].mxu0 %v1017
      %v1070 = vpop.f32.mrb[0].mxu0
      %v1071 = vadd.f32 0.0, %v1070
      %v1072 = vpop.f32.mrb[0].mxu0
      %v1073 = vpop.f32.mrb[0].mxu0
      %v1074 = vadd.f32 0.0, %v1073
      %v1075 = vpop.f32.mrb[0].mxu0
      %1076 = vmatprep.mubr.bf16.mxu0 0
      %1077 = vmatmul.mubr.bf16.gmra.mrb[0].mxu0 %v1020
      %v1078 = vpop.f32.mrb[0].mxu0
      %v1079 = vadd.f32 0.0, %v1078
      %v1080 = vpop.f32.mrb[0].mxu0
      %v1081 = vpop.f32.mrb[0].mxu0
      %v1082 = vadd.f32 0.0, %v1081
      %v1083 = vpop.f32.mrb[0].mxu0
      %1084 = vmatprep.mubr.bf16.mxu0 0
      %1085 = vmatmul.mubr.bf16.gmra.mrb[0].mxu0 %v1023
      %v1086 = vpop.f32.mrb[0].mxu0
      %v1087 = vadd.f32 0.0, %v1086
      %v1088 = vpop.f32.mrb[0].mxu0
      %v1089 = vpop.f32.mrb[0].mxu0
      %v1090 = vadd.f32 0.0, %v1089
      %v1091 = vpop.f32.mrb[0].mxu0
      %1092 = vdwg.mxu0
      %1094 = vrot.lane.b32.xlu0 %v525, 96
      %v1095 = vpop.permute.xlu0 %1094
      %v1097 = vsel %vm397, %v587, 0
      %v1100 = vsel %vm397, %v588, 0
      %v1103 = vsel %vm397, %v589, 0
      %v1106 = vsel %vm397, %v590, 0
      %v1109 = vsel %vm397, %v1095, 0
      %1111 = vmatprep.subr.bf16.mxu0 0
      %1112 = vmatpush1.bf16.xpose.msra.mxu0 %v1109
      %1113 = vmatprep.subr.bf16.mxu0 0
      %1114 = vmatpush1.bf16.xpose.msra.mxu0 0
      %1115 = vmatprep.subr.bf16.mxu0 0
      %1116 = vmatpush1.bf16.xpose.msra.mxu0 0
      %1117 = vmatprep.subr.bf16.mxu0 0
      %1118 = vmatpush1.bf16.xpose.msra.mxu0 0
      %1119 = vmatprep.subr.bf16.mxu0 0
      %1120 = vmatpush1.bf16.xpose.msra.mxu0 0
      %1121 = vmatprep.subr.bf16.mxu0 0
      %1122 = vmatpush1.bf16.xpose.msra.mxu0 0
      %1123 = vmatprep.subr.bf16.mxu0 0
      %1124 = vmatpush1.bf16.xpose.msra.mxu0 0
      %1125 = vmatprep.subr.bf16.mxu0 0
      %1126 = vmatpush1.bf16.xpose.msra.mxu0 0
      %1127 = vmatprep.subr.bf16.mxu0 0
      %1128 = vmatpush1.bf16.xpose.msra.mxu0 0
      %1129 = vmatprep.subr.bf16.mxu0 0
      %1130 = vmatpush1.bf16.xpose.msra.mxu0 0
      %1131 = vmatprep.subr.bf16.mxu0 0
      %1132 = vmatpush1.bf16.xpose.msra.mxu0 0
      %1133 = vmatprep.subr.bf16.mxu0 0
      %1134 = vmatpush1.bf16.xpose.msra.mxu0 0
      %1135 = vmatprep.subr.bf16.mxu0 0
      %1136 = vmatpush1.bf16.xpose.msra.mxu0 0
      %1137 = vmatprep.subr.bf16.mxu0 0
      %1138 = vmatpush1.bf16.xpose.msra.mxu0 0
      %1139 = vmatprep.subr.bf16.mxu0 0
      %1140 = vmatpush1.bf16.xpose.msra.mxu0 0
      %1141 = vmatprep.subr.bf16.mxu0 0
      %1142 = vmatpush1.bf16.xpose.msra.mxu0 0
      %1143 = vmatprep.mubr.bf16.mxu0 0
      %1144 = vmatmul.mubr.bf16.gmra.mrb[0].mxu0 %v1097
      %v1145 = vpop.f32.mrb[0].mxu0
      %v1146 = vadd.f32 0.0, %v1145
      %v1147 = vpop.f32.mrb[0].mxu0
      %v1148 = vpop.f32.mrb[0].mxu0
      %v1149 = vadd.f32 0.0, %v1148
      %v1150 = vpop.f32.mrb[0].mxu0
      %1151 = vmatprep.mubr.bf16.mxu0 0
      %1152 = vmatmul.mubr.bf16.gmra.mrb[0].mxu0 %v1100
      %v1153 = vpop.f32.mrb[0].mxu0
      %v1154 = vadd.f32 0.0, %v1153
      %v1155 = vpop.f32.mrb[0].mxu0
      %v1156 = vpop.f32.mrb[0].mxu0
      %v1157 = vadd.f32 0.0, %v1156
      %v1158 = vpop.f32.mrb[0].mxu0
      %1159 = vmatprep.mubr.bf16.mxu0 0
      %1160 = vmatmul.mubr.bf16.gmra.mrb[0].mxu0 %v1103
      %v1161 = vpop.f32.mrb[0].mxu0
      %v1162 = vadd.f32 0.0, %v1161
      %v1163 = vpop.f32.mrb[0].mxu0
      %v1164 = vpop.f32.mrb[0].mxu0
      %v1165 = vadd.f32 0.0, %v1164
      %v1166 = vpop.f32.mrb[0].mxu0
      %1167 = vmatprep.mubr.bf16.mxu0 0
      %1168 = vmatmul.mubr.bf16.gmra.mrb[0].mxu0 %v1106
      %v1169 = vpop.f32.mrb[0].mxu0
      %v1170 = vadd.f32 0.0, %v1169
      %v1171 = vpop.f32.mrb[0].mxu0
      %v1172 = vpop.f32.mrb[0].mxu0
      %v1173 = vadd.f32 0.0, %v1172
      %v1174 = vpop.f32.mrb[0].mxu0
      %1175 = vdwg.mxu0
      %1177 = vrot.lane.b32.xlu0 %v526, 96
      %v1178 = vpop.permute.xlu0 %1177
      %v1180 = vsel %vm397, %v591, 0
      %v1183 = vsel %vm397, %v592, 0
      %v1186 = vsel %vm397, %v593, 0
      %v1189 = vsel %vm397, %v594, 0
      %v1192 = vsel %vm397, %v1178, 0
      %1194 = vmatprep.subr.bf16.mxu0 0
      %1195 = vmatpush1.bf16.xpose.msra.mxu0 %v1192
      %1196 = vmatprep.subr.bf16.mxu0 0
      %1197 = vmatpush1.bf16.xpose.msra.mxu0 0
      %1198 = vmatprep.subr.bf16.mxu0 0
      %1199 = vmatpush1.bf16.xpose.msra.mxu0 0
      %1200 = vmatprep.subr.bf16.mxu0 0
      %1201 = vmatpush1.bf16.xpose.msra.mxu0 0
      %1202 = vmatprep.subr.bf16.mxu0 0
      %1203 = vmatpush1.bf16.xpose.msra.mxu0 0
      %1204 = vmatprep.subr.bf16.mxu0 0
      %1205 = vmatpush1.bf16.xpose.msra.mxu0 0
      %1206 = vmatprep.subr.bf16.mxu0 0
      %1207 = vmatpush1.bf16.xpose.msra.mxu0 0
      %1208 = vmatprep.subr.bf16.mxu0 0
      %1209 = vmatpush1.bf16.xpose.msra.mxu0 0
      %1210 = vmatprep.subr.bf16.mxu0 0
      %1211 = vmatpush1.bf16.xpose.msra.mxu0 0
      %1212 = vmatprep.subr.bf16.mxu0 0
      %1213 = vmatpush1.bf16.xpose.msra.mxu0 0
      %1214 = vmatprep.subr.bf16.mxu0 0
      %1215 = vmatpush1.bf16.xpose.msra.mxu0 0
      %1216 = vmatprep.subr.bf16.mxu0 0
      %1217 = vmatpush1.bf16.xpose.msra.mxu0 0
      %1218 = vmatprep.subr.bf16.mxu0 0
      %1219 = vmatpush1.bf16.xpose.msra.mxu0 0
      %1220 = vmatprep.subr.bf16.mxu0 0
      %1221 = vmatpush1.bf16.xpose.msra.mxu0 0
      %1222 = vmatprep.subr.bf16.mxu0 0
      %1223 = vmatpush1.bf16.xpose.msra.mxu0 0
      %1224 = vmatprep.subr.bf16.mxu0 0
      %1225 = vmatpush1.bf16.xpose.msra.mxu0 0
      %1226 = vmatprep.mubr.bf16.mxu0 0
      %1227 = vmatmul.mubr.bf16.gmra.mrb[0].mxu0 %v1180
      %v1228 = vpop.f32.mrb[0].mxu0
      %v1229 = vadd.f32 0.0, %v1228
      %v1230 = vpop.f32.mrb[0].mxu0
      %v1231 = vpop.f32.mrb[0].mxu0
      %v1232 = vadd.f32 0.0, %v1231
      %v1233 = vpop.f32.mrb[0].mxu0
      %1234 = vmatprep.mubr.bf16.mxu0 0
      %1235 = vmatmul.mubr.bf16.gmra.mrb[0].mxu0 %v1183
      %v1236 = vpop.f32.mrb[0].mxu0
      %v1237 = vadd.f32 0.0, %v1236
      %v1238 = vpop.f32.mrb[0].mxu0
      %v1239 = vpop.f32.mrb[0].mxu0
      %v1240 = vadd.f32 0.0, %v1239
      %v1241 = vpop.f32.mrb[0].mxu0
      %1242 = vmatprep.mubr.bf16.mxu0 0
      %1243 = vmatmul.mubr.bf16.gmra.mrb[0].mxu0 %v1186
      %v1244 = vpop.f32.mrb[0].mxu0
      %v1245 = vadd.f32 0.0, %v1244
      %v1246 = vpop.f32.mrb[0].mxu0
      %v1247 = vpop.f32.mrb[0].mxu0
      %v1248 = vadd.f32 0.0, %v1247
      %v1249 = vpop.f32.mrb[0].mxu0
      %1250 = vmatprep.mubr.bf16.mxu0 0
      %1251 = vmatmul.mubr.bf16.gmra.mrb[0].mxu0 %v1189
      %v1252 = vpop.f32.mrb[0].mxu0
      %v1253 = vadd.f32 0.0, %v1252
      %v1254 = vpop.f32.mrb[0].mxu0
      %v1255 = vpop.f32.mrb[0].mxu0
      %v1256 = vadd.f32 0.0, %v1255
      %v1257 = vpop.f32.mrb[0].mxu0
      %1258 = vdwg.mxu0
      %v1259 = vld [vmem:[%s3] sm:$0xff]
      %v1260 = vld [vmem:[%s3 + $0x8] sm:$0xff]
      %v1261 = vld [vmem:[%s3 + $0x10] sm:$0xff]
      %v1262 = vld [vmem:[%s3 + $0x18] sm:$0xff]
      %v1263 = vld [vmem:[%s3 + $0x20] sm:$0xff]
      %v1264 = vld [vmem:[%s3 + $0x28] sm:$0xff]
      %v1265 = vld [vmem:[%s3 + $0x30] sm:$0xff]
      %v1266 = vld [vmem:[%s3 + $0x38] sm:$0xff]
      %v1267 = vadd.f32 %v648, %v1259
      %v1268 = vadd.f32 %v651, %v1260
      %v1269 = vadd.f32 %v656, %v1261
      %v1270 = vadd.f32 %v659, %v1262
      %v1271 = vadd.f32 %v664, %v1263
      %v1272 = vadd.f32 %v667, %v1264
      %v1273 = vadd.f32 %v672, %v1265
      %v1274 = vadd.f32 %v675, %v1266
      %v1275 = vadd.f32 %v731, %v1259
      %v1276 = vadd.f32 %v734, %v1260
      %v1277 = vadd.f32 %v739, %v1261
      %v1278 = vadd.f32 %v742, %v1262
      %v1279 = vadd.f32 %v747, %v1263
      %v1280 = vadd.f32 %v750, %v1264
      %v1281 = vadd.f32 %v755, %v1265
      %v1282 = vadd.f32 %v758, %v1266
      %v1283 = vadd.f32 %v814, %v1259
      %v1284 = vadd.f32 %v817, %v1260
      %v1285 = vadd.f32 %v822, %v1261
      %v1286 = vadd.f32 %v825, %v1262
      %v1287 = vadd.f32 %v830, %v1263
      %v1288 = vadd.f32 %v833, %v1264
      %v1289 = vadd.f32 %v838, %v1265
      %v1290 = vadd.f32 %v841, %v1266
      %v1291 = vadd.f32 %v897, %v1259
      %v1292 = vadd.f32 %v900, %v1260
      %v1293 = vadd.f32 %v905, %v1261
      %v1294 = vadd.f32 %v908, %v1262
      %v1295 = vadd.f32 %v913, %v1263
      %v1296 = vadd.f32 %v916, %v1264
      %v1297 = vadd.f32 %v921, %v1265
      %v1298 = vadd.f32 %v924, %v1266
      %v1299 = vadd.f32 %v980, %v1259
      %v1300 = vadd.f32 %v983, %v1260
      %v1301 = vadd.f32 %v988, %v1261
      %v1302 = vadd.f32 %v991, %v1262
      %v1303 = vadd.f32 %v996, %v1263
      %v1304 = vadd.f32 %v999, %v1264
      %v1305 = vadd.f32 %v1004, %v1265
      %v1306 = vadd.f32 %v1007, %v1266
      %v1307 = vadd.f32 %v1063, %v1259
      %v1308 = vadd.f32 %v1066, %v1260
      %v1309 = vadd.f32 %v1071, %v1261
      %v1310 = vadd.f32 %v1074, %v1262
      %v1311 = vadd.f32 %v1079, %v1263
      %v1312 = vadd.f32 %v1082, %v1264
      %v1313 = vadd.f32 %v1087, %v1265
      %v1314 = vadd.f32 %v1090, %v1266
      %v1315 = vadd.f32 %v1146, %v1259
      %v1316 = vadd.f32 %v1149, %v1260
      %v1317 = vadd.f32 %v1154, %v1261
      %v1318 = vadd.f32 %v1157, %v1262
      %v1319 = vadd.f32 %v1162, %v1263
      %v1320 = vadd.f32 %v1165, %v1264
      %v1321 = vadd.f32 %v1170, %v1265
      %v1322 = vadd.f32 %v1173, %v1266
      %v1323 = vadd.f32 %v1229, %v1259
      %v1324 = vadd.f32 %v1232, %v1260
      %v1325 = vadd.f32 %v1237, %v1261
      %v1326 = vadd.f32 %v1240, %v1262
      %v1327 = vadd.f32 %v1245, %v1263
      %v1328 = vadd.f32 %v1248, %v1264
      %v1329 = vadd.f32 %v1253, %v1265
      %v1330 = vadd.f32 %v1256, %v1266
      %vm1331 = vcmask 130048
      %v1332 = vsel %vm1331, %v1267, -inf
      %1333 = vmax.xlane.f32.xlu0 %v1332
      %v1334 = vpop.xlane.xlu0 %1333
      %v1335 = vsel %vm1331, %v1268, -inf
      %1336 = vmax.xlane.f32.xlu0 %v1335
      %v1337 = vpop.xlane.xlu0 %1336
      %v1338 = vsel %vm1331, %v1269, -inf
      %1339 = vmax.xlane.f32.xlu0 %v1338
      %v1340 = vpop.xlane.xlu0 %1339
      %v1341 = vsel %vm1331, %v1270, -inf
      %1342 = vmax.xlane.f32.xlu0 %v1341
      %v1343 = vpop.xlane.xlu0 %1342
      %v1344 = vsel %vm1331, %v1271, -inf
      %1345 = vmax.xlane.f32.xlu0 %v1344
      %v1346 = vpop.xlane.xlu0 %1345
      %v1347 = vsel %vm1331, %v1272, -inf
      %1348 = vmax.xlane.f32.xlu0 %v1347
      %v1349 = vpop.xlane.xlu0 %1348
      %v1350 = vsel %vm1331, %v1273, -inf
      %1351 = vmax.xlane.f32.xlu0 %v1350
      %v1352 = vpop.xlane.xlu0 %1351
      %v1353 = vsel %vm1331, %v1274, -inf
      %1354 = vmax.xlane.f32.xlu0 %v1353
      %v1355 = vpop.xlane.xlu0 %1354
      %v1356 = vsel %vm1331, %v1275, -inf
      %1357 = vmax.xlane.f32.xlu0 %v1356
      %v1358 = vpop.xlane.xlu0 %1357
      %v1359 = vsel %vm1331, %v1276, -inf
      %1360 = vmax.xlane.f32.xlu0 %v1359
      %v1361 = vpop.xlane.xlu0 %1360
      %v1362 = vsel %vm1331, %v1277, -inf
      %1363 = vmax.xlane.f32.xlu0 %v1362
      %v1364 = vpop.xlane.xlu0 %1363
      %v1365 = vsel %vm1331, %v1278, -inf
      %1366 = vmax.xlane.f32.xlu0 %v1365
      %v1367 = vpop.xlane.xlu0 %1366
      %v1368 = vsel %vm1331, %v1279, -inf
      %1369 = vmax.xlane.f32.xlu0 %v1368
      %v1370 = vpop.xlane.xlu0 %1369
      %v1371 = vsel %vm1331, %v1280, -inf
      %1372 = vmax.xlane.f32.xlu0 %v1371
      %v1373 = vpop.xlane.xlu0 %1372
      %v1374 = vsel %vm1331, %v1281, -inf
      %1375 = vmax.xlane.f32.xlu0 %v1374
      %v1376 = vpop.xlane.xlu0 %1375
      %v1377 = vsel %vm1331, %v1282, -inf
      %1378 = vmax.xlane.f32.xlu0 %v1377
      %v1379 = vpop.xlane.xlu0 %1378
      %v1380 = vsel %vm1331, %v1283, -inf
      %1381 = vmax.xlane.f32.xlu0 %v1380
      %v1382 = vpop.xlane.xlu0 %1381
      %v1383 = vsel %vm1331, %v1284, -inf
      %1384 = vmax.xlane.f32.xlu0 %v1383
      %v1385 = vpop.xlane.xlu0 %1384
      %v1386 = vsel %vm1331, %v1285, -inf
      %1387 = vmax.xlane.f32.xlu0 %v1386
      %v1388 = vpop.xlane.xlu0 %1387
      %v1389 = vsel %vm1331, %v1286, -inf
      %1390 = vmax.xlane.f32.xlu0 %v1389
      %v1391 = vpop.xlane.xlu0 %1390
      %v1392 = vsel %vm1331, %v1287, -inf
      %1393 = vmax.xlane.f32.xlu0 %v1392
      %v1394 = vpop.xlane.xlu0 %1393
      %v1395 = vsel %vm1331, %v1288, -inf
      %1396 = vmax.xlane.f32.xlu0 %v1395
      %v1397 = vpop.xlane.xlu0 %1396
      %v1398 = vsel %vm1331, %v1289, -inf
      %1399 = vmax.xlane.f32.xlu0 %v1398
      %v1400 = vpop.xlane.xlu0 %1399
      %v1401 = vsel %vm1331, %v1290, -inf
      %1402 = vmax.xlane.f32.xlu0 %v1401
      %v1403 = vpop.xlane.xlu0 %1402
      %v1404 = vsel %vm1331, %v1291, -inf
      %1405 = vmax.xlane.f32.xlu0 %v1404
      %v1406 = vpop.xlane.xlu0 %1405
      %v1407 = vsel %vm1331, %v1292, -inf
      %1408 = vmax.xlane.f32.xlu0 %v1407
      %v1409 = vpop.xlane.xlu0 %1408
      %v1410 = vsel %vm1331, %v1293, -inf
      %1411 = vmax.xlane.f32.xlu0 %v1410
      %v1412 = vpop.xlane.xlu0 %1411
      %v1413 = vsel %vm1331, %v1294, -inf
      %1414 = vmax.xlane.f32.xlu0 %v1413
      %v1415 = vpop.xlane.xlu0 %1414
      %v1416 = vsel %vm1331, %v1295, -inf
      %1417 = vmax.xlane.f32.xlu0 %v1416
      %v1418 = vpop.xlane.xlu0 %1417
      %v1419 = vsel %vm1331, %v1296, -inf
      %1420 = vmax.xlane.f32.xlu0 %v1419
      %v1421 = vpop.xlane.xlu0 %1420
      %v1422 = vsel %vm1331, %v1297, -inf
      %1423 = vmax.xlane.f32.xlu0 %v1422
      %v1424 = vpop.xlane.xlu0 %1423
      %v1425 = vsel %vm1331, %v1298, -inf
      %1426 = vmax.xlane.f32.xlu0 %v1425
      %v1427 = vpop.xlane.xlu0 %1426
      %v1428 = vsel %vm1331, %v1299, -inf
      %1429 = vmax.xlane.f32.xlu0 %v1428
      %v1430 = vpop.xlane.xlu0 %1429
      %v1431 = vsel %vm1331, %v1300, -inf
      %1432 = vmax.xlane.f32.xlu0 %v1431
      %v1433 = vpop.xlane.xlu0 %1432
      %v1434 = vsel %vm1331, %v1301, -inf
      %1435 = vmax.xlane.f32.xlu0 %v1434
      %v1436 = vpop.xlane.xlu0 %1435
      %v1437 = vsel %vm1331, %v1302, -inf
      %1438 = vmax.xlane.f32.xlu0 %v1437
      %v1439 = vpop.xlane.xlu0 %1438
      %v1440 = vsel %vm1331, %v1303, -inf
      %1441 = vmax.xlane.f32.xlu0 %v1440
      %v1442 = vpop.xlane.xlu0 %1441
      %v1443 = vsel %vm1331, %v1304, -inf
      %1444 = vmax.xlane.f32.xlu0 %v1443
      %v1445 = vpop.xlane.xlu0 %1444
      %v1446 = vsel %vm1331, %v1305, -inf
      %1447 = vmax.xlane.f32.xlu0 %v1446
      %v1448 = vpop.xlane.xlu0 %1447
      %v1449 = vsel %vm1331, %v1306, -inf
      %1450 = vmax.xlane.f32.xlu0 %v1449
      %v1451 = vpop.xlane.xlu0 %1450
      %v1452 = vsel %vm1331, %v1307, -inf
      %1453 = vmax.xlane.f32.xlu0 %v1452
      %v1454 = vpop.xlane.xlu0 %1453
      %v1455 = vsel %vm1331, %v1308, -inf
      %1456 = vmax.xlane.f32.xlu0 %v1455
      %v1457 = vpop.xlane.xlu0 %1456
      %v1458 = vsel %vm1331, %v1309, -inf
      %1459 = vmax.xlane.f32.xlu0 %v1458
      %v1460 = vpop.xlane.xlu0 %1459
      %v1461 = vsel %vm1331, %v1310, -inf
      %1462 = vmax.xlane.f32.xlu0 %v1461
      %v1463 = vpop.xlane.xlu0 %1462
      %v1464 = vsel %vm1331, %v1311, -inf
      %1465 = vmax.xlane.f32.xlu0 %v1464
      %v1466 = vpop.xlane.xlu0 %1465
      %v1467 = vsel %vm1331, %v1312, -inf
      %1468 = vmax.xlane.f32.xlu0 %v1467
      %v1469 = vpop.xlane.xlu0 %1468
      %v1470 = vsel %vm1331, %v1313, -inf
      %1471 = vmax.xlane.f32.xlu0 %v1470
      %v1472 = vpop.xlane.xlu0 %1471
      %v1473 = vsel %vm1331, %v1314, -inf
      %1474 = vmax.xlane.f32.xlu0 %v1473
      %v1475 = vpop.xlane.xlu0 %1474
      %v1476 = vsel %vm1331, %v1315, -inf
      %1477 = vmax.xlane.f32.xlu0 %v1476
      %v1478 = vpop.xlane.xlu0 %1477
      %v1479 = vsel %vm1331, %v1316, -inf
      %1480 = vmax.xlane.f32.xlu0 %v1479
      %v1481 = vpop.xlane.xlu0 %1480
      %v1482 = vsel %vm1331, %v1317, -inf
      %1483 = vmax.xlane.f32.xlu0 %v1482
      %v1484 = vpop.xlane.xlu0 %1483
      %v1485 = vsel %vm1331, %v1318, -inf
      %1486 = vmax.xlane.f32.xlu0 %v1485
      %v1487 = vpop.xlane.xlu0 %1486
      %v1488 = vsel %vm1331, %v1319, -inf
      %1489 = vmax.xlane.f32.xlu0 %v1488
      %v1490 = vpop.xlane.xlu0 %1489
      %v1491 = vsel %vm1331, %v1320, -inf
      %1492 = vmax.xlane.f32.xlu0 %v1491
      %v1493 = vpop.xlane.xlu0 %1492
      %v1494 = vsel %vm1331, %v1321, -inf
      %1495 = vmax.xlane.f32.xlu0 %v1494
      %v1496 = vpop.xlane.xlu0 %1495
      %v1497 = vsel %vm1331, %v1322, -inf
      %1498 = vmax.xlane.f32.xlu0 %v1497
      %v1499 = vpop.xlane.xlu0 %1498
      %v1500 = vsel %vm1331, %v1323, -inf
      %1501 = vmax.xlane.f32.xlu0 %v1500
      %v1502 = vpop.xlane.xlu0 %1501
      %v1503 = vsel %vm1331, %v1324, -inf
      %1504 = vmax.xlane.f32.xlu0 %v1503
      %v1505 = vpop.xlane.xlu0 %1504
      %v1506 = vsel %vm1331, %v1325, -inf
      %1507 = vmax.xlane.f32.xlu0 %v1506
      %v1508 = vpop.xlane.xlu0 %1507
      %v1509 = vsel %vm1331, %v1326, -inf
      %1510 = vmax.xlane.f32.xlu0 %v1509
      %v1511 = vpop.xlane.xlu0 %1510
      %v1512 = vsel %vm1331, %v1327, -inf
      %1513 = vmax.xlane.f32.xlu0 %v1512
      %v1514 = vpop.xlane.xlu0 %1513
      %v1515 = vsel %vm1331, %v1328, -inf
      %1516 = vmax.xlane.f32.xlu0 %v1515
      %v1517 = vpop.xlane.xlu0 %1516
      %v1518 = vsel %vm1331, %v1329, -inf
      %1519 = vmax.xlane.f32.xlu0 %v1518
      %v1520 = vpop.xlane.xlu0 %1519
      %v1521 = vsel %vm1331, %v1330, -inf
      %1522 = vmax.xlane.f32.xlu0 %v1521
      %v1523 = vpop.xlane.xlu0 %1522
      %v1524 = vsub.f32 %v1267, %v1334
      %v1525 = vsub.f32 %v1268, %v1337
      %v1526 = vsub.f32 %v1269, %v1340
      %v1527 = vsub.f32 %v1270, %v1343
      %v1528 = vsub.f32 %v1271, %v1346
      %v1529 = vsub.f32 %v1272, %v1349
      %v1530 = vsub.f32 %v1273, %v1352
      %v1531 = vsub.f32 %v1274, %v1355
      %v1532 = vsub.f32 %v1275, %v1358
      %v1533 = vsub.f32 %v1276, %v1361
      %v1534 = vsub.f32 %v1277, %v1364
      %v1535 = vsub.f32 %v1278, %v1367
      %v1536 = vsub.f32 %v1279, %v1370
      %v1537 = vsub.f32 %v1280, %v1373
      %v1538 = vsub.f32 %v1281, %v1376
      %v1539 = vsub.f32 %v1282, %v1379
      %v1540 = vsub.f32 %v1283, %v1382
      %v1541 = vsub.f32 %v1284, %v1385
      %v1542 = vsub.f32 %v1285, %v1388
      %v1543 = vsub.f32 %v1286, %v1391
      %v1544 = vsub.f32 %v1287, %v1394
      %v1545 = vsub.f32 %v1288, %v1397
      %v1546 = vsub.f32 %v1289, %v1400
      %v1547 = vsub.f32 %v1290, %v1403
      %v1548 = vsub.f32 %v1291, %v1406
      %v1549 = vsub.f32 %v1292, %v1409
      %v1550 = vsub.f32 %v1293, %v1412
      %v1551 = vsub.f32 %v1294, %v1415
      %v1552 = vsub.f32 %v1295, %v1418
      %v1553 = vsub.f32 %v1296, %v1421
      %v1554 = vsub.f32 %v1297, %v1424
      %v1555 = vsub.f32 %v1298, %v1427
      %v1556 = vsub.f32 %v1299, %v1430
      %v1557 = vsub.f32 %v1300, %v1433
      %v1558 = vsub.f32 %v1301, %v1436
      %v1559 = vsub.f32 %v1302, %v1439
      %v1560 = vsub.f32 %v1303, %v1442
      %v1561 = vsub.f32 %v1304, %v1445
      %v1562 = vsub.f32 %v1305, %v1448
      %v1563 = vsub.f32 %v1306, %v1451
      %v1564 = vsub.f32 %v1307, %v1454
      %v1565 = vsub.f32 %v1308, %v1457
      %v1566 = vsub.f32 %v1309, %v1460
      %v1567 = vsub.f32 %v1310, %v1463
      %v1568 = vsub.f32 %v1311, %v1466
      %v1569 = vsub.f32 %v1312, %v1469
      %v1570 = vsub.f32 %v1313, %v1472
      %v1571 = vsub.f32 %v1314, %v1475
      %v1572 = vsub.f32 %v1315, %v1478
      %v1573 = vsub.f32 %v1316, %v1481
      %v1574 = vsub.f32 %v1317, %v1484
      %v1575 = vsub.f32 %v1318, %v1487
      %v1576 = vsub.f32 %v1319, %v1490
      %v1577 = vsub.f32 %v1320, %v1493
      %v1578 = vsub.f32 %v1321, %v1496
      %v1579 = vsub.f32 %v1322, %v1499
      %v1580 = vsub.f32 %v1323, %v1502
      %v1581 = vsub.f32 %v1324, %v1505
      %v1582 = vsub.f32 %v1325, %v1508
      %v1583 = vsub.f32 %v1326, %v1511
      %v1584 = vsub.f32 %v1327, %v1514
      %v1585 = vsub.f32 %v1328, %v1517
      %v1586 = vsub.f32 %v1329, %v1520
      %v1587 = vsub.f32 %v1330, %v1523
      %v1588 = vmul.f32 %v1524, 1.442695
      %v1589 = vpow.pop %v1588
      %v1590 = vmul.f32 %v1525, 1.442695
      %v1591 = vpow.pop %v1590
      %v1592 = vmul.f32 %v1526, 1.442695
      %v1593 = vpow.pop %v1592
      %v1594 = vmul.f32 %v1527, 1.442695
      %v1595 = vpow.pop %v1594
      %v1596 = vmul.f32 %v1528, 1.442695
      %v1597 = vpow.pop %v1596
      %v1598 = vmul.f32 %v1529, 1.442695
      %v1599 = vpow.pop %v1598
      %v1600 = vmul.f32 %v1530, 1.442695
      %v1601 = vpow.pop %v1600
      %v1602 = vmul.f32 %v1531, 1.442695
      %v1603 = vpow.pop %v1602
      %v1604 = vmul.f32 %v1532, 1.442695
      %v1605 = vpow.pop %v1604
      %v1606 = vmul.f32 %v1533, 1.442695
      %v1607 = vpow.pop %v1606
      %v1608 = vmul.f32 %v1534, 1.442695
      %v1609 = vpow.pop %v1608
      %v1610 = vmul.f32 %v1535, 1.442695
      %v1611 = vpow.pop %v1610
      %v1612 = vmul.f32 %v1536, 1.442695
      %v1613 = vpow.pop %v1612
      %v1614 = vmul.f32 %v1537, 1.442695
      %v1615 = vpow.pop %v1614
      %v1616 = vmul.f32 %v1538, 1.442695
      %v1617 = vpow.pop %v1616
      %v1618 = vmul.f32 %v1539, 1.442695
      %v1619 = vpow.pop %v1618
      %v1620 = vmul.f32 %v1540, 1.442695
      %v1621 = vpow.pop %v1620
      %v1622 = vmul.f32 %v1541, 1.442695
      %v1623 = vpow.pop %v1622
      %v1624 = vmul.f32 %v1542, 1.442695
      %v1625 = vpow.pop %v1624
      %v1626 = vmul.f32 %v1543, 1.442695
      %v1627 = vpow.pop %v1626
      %v1628 = vmul.f32 %v1544, 1.442695
      %v1629 = vpow.pop %v1628
      %v1630 = vmul.f32 %v1545, 1.442695
      %v1631 = vpow.pop %v1630
      %v1632 = vmul.f32 %v1546, 1.442695
      %v1633 = vpow.pop %v1632
      %v1634 = vmul.f32 %v1547, 1.442695
      %v1635 = vpow.pop %v1634
      %v1636 = vmul.f32 %v1548, 1.442695
      %v1637 = vpow.pop %v1636
      %v1638 = vmul.f32 %v1549, 1.442695
      %v1639 = vpow.pop %v1638
      %v1640 = vmul.f32 %v1550, 1.442695
      %v1641 = vpow.pop %v1640
      %v1642 = vmul.f32 %v1551, 1.442695
      %v1643 = vpow.pop %v1642
      %v1644 = vmul.f32 %v1552, 1.442695
      %v1645 = vpow.pop %v1644
      %v1646 = vmul.f32 %v1553, 1.442695
      %v1647 = vpow.pop %v1646
      %v1648 = vmul.f32 %v1554, 1.442695
      %v1649 = vpow.pop %v1648
      %v1650 = vmul.f32 %v1555, 1.442695
      %v1651 = vpow.pop %v1650
      %v1652 = vmul.f32 %v1556, 1.442695
      %v1653 = vpow.pop %v1652
      %v1654 = vmul.f32 %v1557, 1.442695
      %v1655 = vpow.pop %v1654
      %v1656 = vmul.f32 %v1558, 1.442695
      %v1657 = vpow.pop %v1656
      %v1658 = vmul.f32 %v1559, 1.442695
      %v1659 = vpow.pop %v1658
      %v1660 = vmul.f32 %v1560, 1.442695
      %v1661 = vpow.pop %v1660
      %v1662 = vmul.f32 %v1561, 1.442695
      %v1663 = vpow.pop %v1662
      %v1664 = vmul.f32 %v1562, 1.442695
      %v1665 = vpow.pop %v1664
      %v1666 = vmul.f32 %v1563, 1.442695
      %v1667 = vpow.pop %v1666
      %v1668 = vmul.f32 %v1564, 1.442695
      %v1669 = vpow.pop %v1668
      %v1670 = vmul.f32 %v1565, 1.442695
      %v1671 = vpow.pop %v1670
      %v1672 = vmul.f32 %v1566, 1.442695
      %v1673 = vpow.pop %v1672
      %v1674 = vmul.f32 %v1567, 1.442695
      %v1675 = vpow.pop %v1674
      %v1676 = vmul.f32 %v1568, 1.442695
      %v1677 = vpow.pop %v1676
      %v1678 = vmul.f32 %v1569, 1.442695
      %v1679 = vpow.pop %v1678
      %v1680 = vmul.f32 %v1570, 1.442695
      %v1681 = vpow.pop %v1680
      %v1682 = vmul.f32 %v1571, 1.442695
      %v1683 = vpow.pop %v1682
      %v1684 = vmul.f32 %v1572, 1.442695
      %v1685 = vpow.pop %v1684
      %v1686 = vmul.f32 %v1573, 1.442695
      %v1687 = vpow.pop %v1686
      %v1688 = vmul.f32 %v1574, 1.442695
      %v1689 = vpow.pop %v1688
      %v1690 = vmul.f32 %v1575, 1.442695
      %v1691 = vpow.pop %v1690
      %v1692 = vmul.f32 %v1576, 1.442695
      %v1693 = vpow.pop %v1692
      %v1694 = vmul.f32 %v1577, 1.442695
      %v1695 = vpow.pop %v1694
      %v1696 = vmul.f32 %v1578, 1.442695
      %v1697 = vpow.pop %v1696
      %v1698 = vmul.f32 %v1579, 1.442695
      %v1699 = vpow.pop %v1698
      %v1700 = vmul.f32 %v1580, 1.442695
      %v1701 = vpow.pop %v1700
      %v1702 = vmul.f32 %v1581, 1.442695
      %v1703 = vpow.pop %v1702
      %v1704 = vmul.f32 %v1582, 1.442695
      %v1705 = vpow.pop %v1704
      %v1706 = vmul.f32 %v1583, 1.442695
      %v1707 = vpow.pop %v1706
      %v1708 = vmul.f32 %v1584, 1.442695
      %v1709 = vpow.pop %v1708
      %v1710 = vmul.f32 %v1585, 1.442695
      %v1711 = vpow.pop %v1710
      %v1712 = vmul.f32 %v1586, 1.442695
      %v1713 = vpow.pop %v1712
      %v1714 = vmul.f32 %v1587, 1.442695
      %v1715 = vpow.pop %v1714
      %v1716 = vsel %vm1331, %v1589, 0.0
      %1717 = vadd.xlane.f32.xlu0 %v1716
      %v1718 = vpop.xlane.xlu0 %1717
      %v1719 = vsel %vm1331, %v1591, 0.0
      %1720 = vadd.xlane.f32.xlu0 %v1719
      %v1721 = vpop.xlane.xlu0 %1720
      %v1722 = vsel %vm1331, %v1593, 0.0
      %1723 = vadd.xlane.f32.xlu0 %v1722
      %v1724 = vpop.xlane.xlu0 %1723
      %v1725 = vsel %vm1331, %v1595, 0.0
      %1726 = vadd.xlane.f32.xlu0 %v1725
      %v1727 = vpop.xlane.xlu0 %1726
      %v1728 = vsel %vm1331, %v1597, 0.0
      %1729 = vadd.xlane.f32.xlu0 %v1728
      %v1730 = vpop.xlane.xlu0 %1729
      %v1731 = vsel %vm1331, %v1599, 0.0
      %1732 = vadd.xlane.f32.xlu0 %v1731
      %v1733 = vpop.xlane.xlu0 %1732
      %v1734 = vsel %vm1331, %v1601, 0.0
      %1735 = vadd.xlane.f32.xlu0 %v1734
      %v1736 = vpop.xlane.xlu0 %1735
      %v1737 = vsel %vm1331, %v1603, 0.0
      %1738 = vadd.xlane.f32.xlu0 %v1737
      %v1739 = vpop.xlane.xlu0 %1738
      %v1740 = vsel %vm1331, %v1605, 0.0
      %1741 = vadd.xlane.f32.xlu0 %v1740
      %v1742 = vpop.xlane.xlu0 %1741
      %v1743 = vsel %vm1331, %v1607, 0.0
      %1744 = vadd.xlane.f32.xlu0 %v1743
      %v1745 = vpop.xlane.xlu0 %1744
      %v1746 = vsel %vm1331, %v1609, 0.0
      %1747 = vadd.xlane.f32.xlu0 %v1746
      %v1748 = vpop.xlane.xlu0 %1747
      %v1749 = vsel %vm1331, %v1611, 0.0
      %1750 = vadd.xlane.f32.xlu0 %v1749
      %v1751 = vpop.xlane.xlu0 %1750
      %v1752 = vsel %vm1331, %v1613, 0.0
      %1753 = vadd.xlane.f32.xlu0 %v1752
      %v1754 = vpop.xlane.xlu0 %1753
      %v1755 = vsel %vm1331, %v1615, 0.0
      %1756 = vadd.xlane.f32.xlu0 %v1755
      %v1757 = vpop.xlane.xlu0 %1756
      %v1758 = vsel %vm1331, %v1617, 0.0
      %1759 = vadd.xlane.f32.xlu0 %v1758
      %v1760 = vpop.xlane.xlu0 %1759
      %v1761 = vsel %vm1331, %v1619, 0.0
      %1762 = vadd.xlane.f32.xlu0 %v1761
      %v1763 = vpop.xlane.xlu0 %1762
      %v1764 = vsel %vm1331, %v1621, 0.0
      %1765 = vadd.xlane.f32.xlu0 %v1764
      %v1766 = vpop.xlane.xlu0 %1765
      %v1767 = vsel %vm1331, %v1623, 0.0
      %1768 = vadd.xlane.f32.xlu0 %v1767
      %v1769 = vpop.xlane.xlu0 %1768
      %v1770 = vsel %vm1331, %v1625, 0.0
      %1771 = vadd.xlane.f32.xlu0 %v1770
      %v1772 = vpop.xlane.xlu0 %1771
      %v1773 = vsel %vm1331, %v1627, 0.0
      %1774 = vadd.xlane.f32.xlu0 %v1773
      %v1775 = vpop.xlane.xlu0 %1774
      %v1776 = vsel %vm1331, %v1629, 0.0
      %1777 = vadd.xlane.f32.xlu0 %v1776
      %v1778 = vpop.xlane.xlu0 %1777
      %v1779 = vsel %vm1331, %v1631, 0.0
      %1780 = vadd.xlane.f32.xlu0 %v1779
      %v1781 = vpop.xlane.xlu0 %1780
      %v1782 = vsel %vm1331, %v1633, 0.0
      %1783 = vadd.xlane.f32.xlu0 %v1782
      %v1784 = vpop.xlane.xlu0 %1783
      %v1785 = vsel %vm1331, %v1635, 0.0
      %1786 = vadd.xlane.f32.xlu0 %v1785
      %v1787 = vpop.xlane.xlu0 %1786
      %v1788 = vsel %vm1331, %v1637, 0.0
      %1789 = vadd.xlane.f32.xlu0 %v1788
      %v1790 = vpop.xlane.xlu0 %1789
      %v1791 = vsel %vm1331, %v1639, 0.0
      %1792 = vadd.xlane.f32.xlu0 %v1791
      %v1793 = vpop.xlane.xlu0 %1792
      %v1794 = vsel %vm1331, %v1641, 0.0
      %1795 = vadd.xlane.f32.xlu0 %v1794
      %v1796 = vpop.xlane.xlu0 %1795
      %v1797 = vsel %vm1331, %v1643, 0.0
      %1798 = vadd.xlane.f32.xlu0 %v1797
      %v1799 = vpop.xlane.xlu0 %1798
      %v1800 = vsel %vm1331, %v1645, 0.0
      %1801 = vadd.xlane.f32.xlu0 %v1800
      %v1802 = vpop.xlane.xlu0 %1801
      %v1803 = vsel %vm1331, %v1647, 0.0
      %1804 = vadd.xlane.f32.xlu0 %v1803
      %v1805 = vpop.xlane.xlu0 %1804
      %v1806 = vsel %vm1331, %v1649, 0.0
      %1807 = vadd.xlane.f32.xlu0 %v1806
      %v1808 = vpop.xlane.xlu0 %1807
      %v1809 = vsel %vm1331, %v1651, 0.0
      %1810 = vadd.xlane.f32.xlu0 %v1809
      %v1811 = vpop.xlane.xlu0 %1810
      %v1812 = vsel %vm1331, %v1653, 0.0
      %1813 = vadd.xlane.f32.xlu0 %v1812
      %v1814 = vpop.xlane.xlu0 %1813
      %v1815 = vsel %vm1331, %v1655, 0.0
      %1816 = vadd.xlane.f32.xlu0 %v1815
      %v1817 = vpop.xlane.xlu0 %1816
      %v1818 = vsel %vm1331, %v1657, 0.0
      %1819 = vadd.xlane.f32.xlu0 %v1818
      %v1820 = vpop.xlane.xlu0 %1819
      %v1821 = vsel %vm1331, %v1659, 0.0
      %1822 = vadd.xlane.f32.xlu0 %v1821
      %v1823 = vpop.xlane.xlu0 %1822
      %v1824 = vsel %vm1331, %v1661, 0.0
      %1825 = vadd.xlane.f32.xlu0 %v1824
      %v1826 = vpop.xlane.xlu0 %1825
      %v1827 = vsel %vm1331, %v1663, 0.0
      %1828 = vadd.xlane.f32.xlu0 %v1827
      %v1829 = vpop.xlane.xlu0 %1828
      %v1830 = vsel %vm1331, %v1665, 0.0
      %1831 = vadd.xlane.f32.xlu0 %v1830
      %v1832 = vpop.xlane.xlu0 %1831
      %v1833 = vsel %vm1331, %v1667, 0.0
      %1834 = vadd.xlane.f32.xlu0 %v1833
      %v1835 = vpop.xlane.xlu0 %1834
      %v1836 = vsel %vm1331, %v1669, 0.0
      %1837 = vadd.xlane.f32.xlu0 %v1836
      %v1838 = vpop.xlane.xlu0 %1837
      %v1839 = vsel %vm1331, %v1671, 0.0
      %1840 = vadd.xlane.f32.xlu0 %v1839
      %v1841 = vpop.xlane.xlu0 %1840
      %v1842 = vsel %vm1331, %v1673, 0.0
      %1843 = vadd.xlane.f32.xlu0 %v1842
      %v1844 = vpop.xlane.xlu0 %1843
      %v1845 = vsel %vm1331, %v1675, 0.0
      %1846 = vadd.xlane.f32.xlu0 %v1845
      %v1847 = vpop.xlane.xlu0 %1846
      %v1848 = vsel %vm1331, %v1677, 0.0
      %1849 = vadd.xlane.f32.xlu0 %v1848
      %v1850 = vpop.xlane.xlu0 %1849
      %v1851 = vsel %vm1331, %v1679, 0.0
      %1852 = vadd.xlane.f32.xlu0 %v1851
      %v1853 = vpop.xlane.xlu0 %1852
      %v1854 = vsel %vm1331, %v1681, 0.0
      %1855 = vadd.xlane.f32.xlu0 %v1854
      %v1856 = vpop.xlane.xlu0 %1855
      %v1857 = vsel %vm1331, %v1683, 0.0
      %1858 = vadd.xlane.f32.xlu0 %v1857
      %v1859 = vpop.xlane.xlu0 %1858
      %v1860 = vsel %vm1331, %v1685, 0.0
      %1861 = vadd.xlane.f32.xlu0 %v1860
      %v1862 = vpop.xlane.xlu0 %1861
      %v1863 = vsel %vm1331, %v1687, 0.0
      %1864 = vadd.xlane.f32.xlu0 %v1863
      %v1865 = vpop.xlane.xlu0 %1864
      %v1866 = vsel %vm1331, %v1689, 0.0
      %1867 = vadd.xlane.f32.xlu0 %v1866
      %v1868 = vpop.xlane.xlu0 %1867
      %v1869 = vsel %vm1331, %v1691, 0.0
      %1870 = vadd.xlane.f32.xlu0 %v1869
      %v1871 = vpop.xlane.xlu0 %1870
      %v1872 = vsel %vm1331, %v1693, 0.0
      %1873 = vadd.xlane.f32.xlu0 %v1872
      %v1874 = vpop.xlane.xlu0 %1873
      %v1875 = vsel %vm1331, %v1695, 0.0
      %1876 = vadd.xlane.f32.xlu0 %v1875
      %v1877 = vpop.xlane.xlu0 %1876
      %v1878 = vsel %vm1331, %v1697, 0.0
      %1879 = vadd.xlane.f32.xlu0 %v1878
      %v1880 = vpop.xlane.xlu0 %1879
      %v1881 = vsel %vm1331, %v1699, 0.0
      %1882 = vadd.xlane.f32.xlu0 %v1881
      %v1883 = vpop.xlane.xlu0 %1882
      %v1884 = vsel %vm1331, %v1701, 0.0
      %1885 = vadd.xlane.f32.xlu0 %v1884
      %v1886 = vpop.xlane.xlu0 %1885
      %v1887 = vsel %vm1331, %v1703, 0.0
      %1888 = vadd.xlane.f32.xlu0 %v1887
      %v1889 = vpop.xlane.xlu0 %1888
      %v1890 = vsel %vm1331, %v1705, 0.0
      %1891 = vadd.xlane.f32.xlu0 %v1890
      %v1892 = vpop.xlane.xlu0 %1891
      %v1893 = vsel %vm1331, %v1707, 0.0
      %1894 = vadd.xlane.f32.xlu0 %v1893
      %v1895 = vpop.xlane.xlu0 %1894
      %v1896 = vsel %vm1331, %v1709, 0.0
      %1897 = vadd.xlane.f32.xlu0 %v1896
      %v1898 = vpop.xlane.xlu0 %1897
      %v1899 = vsel %vm1331, %v1711, 0.0
      %1900 = vadd.xlane.f32.xlu0 %v1899
      %v1901 = vpop.xlane.xlu0 %1900
      %v1902 = vsel %vm1331, %v1713, 0.0
      %1903 = vadd.xlane.f32.xlu0 %v1902
      %v1904 = vpop.xlane.xlu0 %1903
      %v1905 = vsel %vm1331, %v1715, 0.0
      %1906 = vadd.xlane.f32.xlu0 %v1905
      %v1907 = vpop.xlane.xlu0 %1906
      %v1908 = vrcp.pop %v1718
      %v1909 = vrcp.pop %v1721
      %v1910 = vrcp.pop %v1724
      %v1911 = vrcp.pop %v1727
      %v1912 = vrcp.pop %v1730
      %v1913 = vrcp.pop %v1733
      %v1914 = vrcp.pop %v1736
      %v1915 = vrcp.pop %v1739
      %v1916 = vrcp.pop %v1742
      %v1917 = vrcp.pop %v1745
      %v1918 = vrcp.pop %v1748
      %v1919 = vrcp.pop %v1751
      %v1920 = vrcp.pop %v1754
      %v1921 = vrcp.pop %v1757
      %v1922 = vrcp.pop %v1760
      %v1923 = vrcp.pop %v1763
      %v1924 = vrcp.pop %v1766
      %v1925 = vrcp.pop %v1769
      %v1926 = vrcp.pop %v1772
      %v1927 = vrcp.pop %v1775
      %v1928 = vrcp.pop %v1778
      %v1929 = vrcp.pop %v1781
      %v1930 = vrcp.pop %v1784
      %v1931 = vrcp.pop %v1787
      %v1932 = vrcp.pop %v1790
      %v1933 = vrcp.pop %v1793
      %v1934 = vrcp.pop %v1796
      %v1935 = vrcp.pop %v1799
      %v1936 = vrcp.pop %v1802
      %v1937 = vrcp.pop %v1805
      %v1938 = vrcp.pop %v1808
      %v1939 = vrcp.pop %v1811
      %v1940 = vrcp.pop %v1814
      %v1941 = vrcp.pop %v1817
      %v1942 = vrcp.pop %v1820
      %v1943 = vrcp.pop %v1823
      %v1944 = vrcp.pop %v1826
      %v1945 = vrcp.pop %v1829
      %v1946 = vrcp.pop %v1832
      %v1947 = vrcp.pop %v1835
      %v1948 = vrcp.pop %v1838
      %v1949 = vrcp.pop %v1841
      %v1950 = vrcp.pop %v1844
      %v1951 = vrcp.pop %v1847
      %v1952 = vrcp.pop %v1850
      %v1953 = vrcp.pop %v1853
      %v1954 = vrcp.pop %v1856
      %v1955 = vrcp.pop %v1859
      %v1956 = vrcp.pop %v1862
      %v1957 = vrcp.pop %v1865
      %v1958 = vrcp.pop %v1868
      %v1959 = vrcp.pop %v1871
      %v1960 = vrcp.pop %v1874
      %v1961 = vrcp.pop %v1877
      %v1962 = vrcp.pop %v1880
      %v1963 = vrcp.pop %v1883
      %v1964 = vrcp.pop %v1886
      %v1965 = vrcp.pop %v1889
      %v1966 = vrcp.pop %v1892
      %v1967 = vrcp.pop %v1895
      %v1968 = vrcp.pop %v1898
      %v1969 = vrcp.pop %v1901
      %v1970 = vrcp.pop %v1904
      %v1971 = vrcp.pop %v1907
      %v1972 = vmul.f32 %v1589, %v1908
      %v1973 = vmul.f32 %v1591, %v1909
      %v1974 = vmul.f32 %v1593, %v1910
      %v1975 = vmul.f32 %v1595, %v1911
      %v1976 = vmul.f32 %v1597, %v1912
      %v1977 = vmul.f32 %v1599, %v1913
      %v1978 = vmul.f32 %v1601, %v1914
      %v1979 = vmul.f32 %v1603, %v1915
      %v1980 = vmul.f32 %v1605, %v1916
      %v1981 = vmul.f32 %v1607, %v1917
      %v1982 = vmul.f32 %v1609, %v1918
      %v1983 = vmul.f32 %v1611, %v1919
      %v1984 = vmul.f32 %v1613, %v1920
      %v1985 = vmul.f32 %v1615, %v1921
      %v1986 = vmul.f32 %v1617, %v1922
      %v1987 = vmul.f32 %v1619, %v1923
      %v1988 = vmul.f32 %v1621, %v1924
      %v1989 = vmul.f32 %v1623, %v1925
      %v1990 = vmul.f32 %v1625, %v1926
      %v1991 = vmul.f32 %v1627, %v1927
      %v1992 = vmul.f32 %v1629, %v1928
      %v1993 = vmul.f32 %v1631, %v1929
      %v1994 = vmul.f32 %v1633, %v1930
      %v1995 = vmul.f32 %v1635, %v1931
      %v1996 = vmul.f32 %v1637, %v1932
      %v1997 = vmul.f32 %v1639, %v1933
      %v1998 = vmul.f32 %v1641, %v1934
      %v1999 = vmul.f32 %v1643, %v1935
      %v2000 = vmul.f32 %v1645, %v1936
      %v2001 = vmul.f32 %v1647, %v1937
      %v2002 = vmul.f32 %v1649, %v1938
      %v2003 = vmul.f32 %v1651, %v1939
      %v2004 = vmul.f32 %v1653, %v1940
      %v2005 = vmul.f32 %v1655, %v1941
      %v2006 = vmul.f32 %v1657, %v1942
      %v2007 = vmul.f32 %v1659, %v1943
      %v2008 = vmul.f32 %v1661, %v1944
      %v2009 = vmul.f32 %v1663, %v1945
      %v2010 = vmul.f32 %v1665, %v1946
      %v2011 = vmul.f32 %v1667, %v1947
      %v2012 = vmul.f32 %v1669, %v1948
      %v2013 = vmul.f32 %v1671, %v1949
      %v2014 = vmul.f32 %v1673, %v1950
      %v2015 = vmul.f32 %v1675, %v1951
      %v2016 = vmul.f32 %v1677, %v1952
      %v2017 = vmul.f32 %v1679, %v1953
      %v2018 = vmul.f32 %v1681, %v1954
      %v2019 = vmul.f32 %v1683, %v1955
      %v2020 = vmul.f32 %v1685, %v1956
      %v2021 = vmul.f32 %v1687, %v1957
      %v2022 = vmul.f32 %v1689, %v1958
      %v2023 = vmul.f32 %v1691, %v1959
      %v2024 = vmul.f32 %v1693, %v1960
      %v2025 = vmul.f32 %v1695, %v1961
      %v2026 = vmul.f32 %v1697, %v1962
      %v2027 = vmul.f32 %v1699, %v1963
      %v2028 = vmul.f32 %v1701, %v1964
      %v2029 = vmul.f32 %v1703, %v1965
      %v2030 = vmul.f32 %v1705, %v1966
      %v2031 = vmul.f32 %v1707, %v1967
      %v2032 = vmul.f32 %v1709, %v1968
      %v2033 = vmul.f32 %v1711, %v1969
      %v2034 = vmul.f32 %v1713, %v1970
      %v2035 = vmul.f32 %v1715, %v1971
      %v2036 = vpack.c.bf16 %v1973, %v1972
      %v2037 = vpack.c.bf16 %v1975, %v1974
      %v2038 = vpack.c.bf16 %v1977, %v1976
      %v2039 = vpack.c.bf16 %v1979, %v1978
      %v2040 = vpack.c.bf16 %v1981, %v1980
      %v2041 = vpack.c.bf16 %v1983, %v1982
      %v2042 = vpack.c.bf16 %v1985, %v1984
      %v2043 = vpack.c.bf16 %v1987, %v1986
      %v2044 = vpack.c.bf16 %v1989, %v1988
      %v2045 = vpack.c.bf16 %v1991, %v1990
      %v2046 = vpack.c.bf16 %v1993, %v1992
      %v2047 = vpack.c.bf16 %v1995, %v1994
      %v2048 = vpack.c.bf16 %v1997, %v1996
      %v2049 = vpack.c.bf16 %v1999, %v1998
      %v2050 = vpack.c.bf16 %v2001, %v2000
      %v2051 = vpack.c.bf16 %v2003, %v2002
      %v2052 = vpack.c.bf16 %v2005, %v2004
      %v2053 = vpack.c.bf16 %v2007, %v2006
      %v2054 = vpack.c.bf16 %v2009, %v2008
      %v2055 = vpack.c.bf16 %v2011, %v2010
      %v2056 = vpack.c.bf16 %v2013, %v2012
      %v2057 = vpack.c.bf16 %v2015, %v2014
      %v2058 = vpack.c.bf16 %v2017, %v2016
      %v2059 = vpack.c.bf16 %v2019, %v2018
      %v2060 = vpack.c.bf16 %v2021, %v2020
      %v2061 = vpack.c.bf16 %v2023, %v2022
      %v2062 = vpack.c.bf16 %v2025, %v2024
      %v2063 = vpack.c.bf16 %v2027, %v2026
      %v2064 = vpack.c.bf16 %v2029, %v2028
      %v2065 = vpack.c.bf16 %v2031, %v2030
      %v2066 = vpack.c.bf16 %v2033, %v2032
      %v2067 = vpack.c.bf16 %v2035, %v2034
      %2068 = vrot.lane.b32.xlu0 %v519, 64
      %v2069 = vpop.permute.xlu0 %2068
      %v2072 = vsel %vm1331, %v2036, 0
      %v2075 = vsel %vm1331, %v2037, 0
      %v2078 = vsel %vm1331, %v2038, 0
      %v2081 = vsel %vm1331, %v2039, 0
      %2083 = vmatprep.subr.bf16.mxu0 0
      %2084 = vmatpush1.bf16.msra.mxu0 %v2069
      %2085 = vmatprep.subr.bf16.mxu0 0
      %2086 = vmatpush1.bf16.msra.mxu0 0
      %2087 = vmatprep.subr.bf16.mxu0 0
      %2088 = vmatpush1.bf16.msra.mxu0 0
      %2089 = vmatprep.subr.bf16.mxu0 0
      %2090 = vmatpush1.bf16.msra.mxu0 0
      %2091 = vmatprep.subr.bf16.mxu0 0
      %2092 = vmatpush1.bf16.msra.mxu0 0
      %2093 = vmatprep.subr.bf16.mxu0 0
      %2094 = vmatpush1.bf16.msra.mxu0 0
      %2095 = vmatprep.subr.bf16.mxu0 0
      %2096 = vmatpush1.bf16.msra.mxu0 0
      %2097 = vmatprep.subr.bf16.mxu0 0
      %2098 = vmatpush1.bf16.msra.mxu0 0
      %2099 = vmatprep.subr.bf16.mxu0 0
      %2100 = vmatpush1.bf16.msra.mxu0 0
      %2101 = vmatprep.subr.bf16.mxu0 0
      %2102 = vmatpush1.bf16.msra.mxu0 0
      %2103 = vmatprep.subr.bf16.mxu0 0
      %2104 = vmatpush1.bf16.msra.mxu0 0
      %2105 = vmatprep.subr.bf16.mxu0 0
      %2106 = vmatpush1.bf16.msra.mxu0 0
      %2107 = vmatprep.subr.bf16.mxu0 0
      %2108 = vmatpush1.bf16.msra.mxu0 0
      %2109 = vmatprep.subr.bf16.mxu0 0
      %2110 = vmatpush1.bf16.msra.mxu0 0
      %2111 = vmatprep.subr.bf16.mxu0 0
      %2112 = vmatpush1.bf16.msra.mxu0 0
      %2113 = vmatprep.subr.bf16.mxu0 0
      %2114 = vmatpush1.bf16.msra.mxu0 0
      %2115 = vmatprep.mubr.bf16.mxu0 0
      %2116 = vmatmul.mubr.bf16.gmra.mrb[0].mxu0 %v2072
      %v2117 = vpop.f32.mrb[0].mxu0
      %v2118 = vadd.f32 0.0, %v2117
      %v2119 = vpop.f32.mrb[0].mxu0
      %v2120 = vpop.f32.mrb[0].mxu0
      %v2121 = vadd.f32 0.0, %v2120
      %v2122 = vpop.f32.mrb[0].mxu0
      %2123 = vmatprep.mubr.bf16.mxu0 0
      %2124 = vmatmul.mubr.bf16.gmra.mrb[0].mxu0 %v2075
      %v2125 = vpop.f32.mrb[0].mxu0
      %v2126 = vadd.f32 0.0, %v2125
      %v2127 = vpop.f32.mrb[0].mxu0
      %v2128 = vpop.f32.mrb[0].mxu0
      %v2129 = vadd.f32 0.0, %v2128
      %v2130 = vpop.f32.mrb[0].mxu0
      %2131 = vmatprep.mubr.bf16.mxu0 0
      %2132 = vmatmul.mubr.bf16.gmra.mrb[0].mxu0 %v2078
      %v2133 = vpop.f32.mrb[0].mxu0
      %v2134 = vadd.f32 0.0, %v2133
      %v2135 = vpop.f32.mrb[0].mxu0
      %v2136 = vpop.f32.mrb[0].mxu0
      %v2137 = vadd.f32 0.0, %v2136
      %v2138 = vpop.f32.mrb[0].mxu0
      %2139 = vmatprep.mubr.bf16.mxu0 0
      %2140 = vmatmul.mubr.bf16.gmra.mrb[0].mxu0 %v2081
      %v2141 = vpop.f32.mrb[0].mxu0
      %v2142 = vadd.f32 0.0, %v2141
      %v2143 = vpop.f32.mrb[0].mxu0
      %v2144 = vpop.f32.mrb[0].mxu0
      %v2145 = vadd.f32 0.0, %v2144
      %v2146 = vpop.f32.mrb[0].mxu0
      %2147 = vdwg.mxu0
      %2148 = vrot.lane.b32.xlu0 %v520, 64
      %v2149 = vpop.permute.xlu0 %2148
      %v2152 = vsel %vm1331, %v2040, 0
      %v2155 = vsel %vm1331, %v2041, 0
      %v2158 = vsel %vm1331, %v2042, 0
      %v2161 = vsel %vm1331, %v2043, 0
      %2163 = vmatprep.subr.bf16.mxu0 0
      %2164 = vmatpush1.bf16.msra.mxu0 %v2149
      %2165 = vmatprep.subr.bf16.mxu0 0
      %2166 = vmatpush1.bf16.msra.mxu0 0
      %2167 = vmatprep.subr.bf16.mxu0 0
      %2168 = vmatpush1.bf16.msra.mxu0 0
      %2169 = vmatprep.subr.bf16.mxu0 0
      %2170 = vmatpush1.bf16.msra.mxu0 0
      %2171 = vmatprep.subr.bf16.mxu0 0
      %2172 = vmatpush1.bf16.msra.mxu0 0
      %2173 = vmatprep.subr.bf16.mxu0 0
      %2174 = vmatpush1.bf16.msra.mxu0 0
      %2175 = vmatprep.subr.bf16.mxu0 0
      %2176 = vmatpush1.bf16.msra.mxu0 0
      %2177 = vmatprep.subr.bf16.mxu0 0
      %2178 = vmatpush1.bf16.msra.mxu0 0
      %2179 = vmatprep.subr.bf16.mxu0 0
      %2180 = vmatpush1.bf16.msra.mxu0 0
      %2181 = vmatprep.subr.bf16.mxu0 0
      %2182 = vmatpush1.bf16.msra.mxu0 0
      %2183 = vmatprep.subr.bf16.mxu0 0
      %2184 = vmatpush1.bf16.msra.mxu0 0
      %2185 = vmatprep.subr.bf16.mxu0 0
      %2186 = vmatpush1.bf16.msra.mxu0 0
      %2187 = vmatprep.subr.bf16.mxu0 0
      %2188 = vmatpush1.bf16.msra.mxu0 0
      %2189 = vmatprep.subr.bf16.mxu0 0
      %2190 = vmatpush1.bf16.msra.mxu0 0
      %2191 = vmatprep.subr.bf16.mxu0 0
      %2192 = vmatpush1.bf16.msra.mxu0 0
      %2193 = vmatprep.subr.bf16.mxu0 0
      %2194 = vmatpush1.bf16.msra.mxu0 0
      %2195 = vmatprep.mubr.bf16.mxu0 0
      %2196 = vmatmul.mubr.bf16.gmra.mrb[0].mxu0 %v2152
      %v2197 = vpop.f32.mrb[0].mxu0
      %v2198 = vadd.f32 0.0, %v2197
      %v2199 = vpop.f32.mrb[0].mxu0
      %v2200 = vpop.f32.mrb[0].mxu0
      %v2201 = vadd.f32 0.0, %v2200
      %v2202 = vpop.f32.mrb[0].mxu0
      %2203 = vmatprep.mubr.bf16.mxu0 0
      %2204 = vmatmul.mubr.bf16.gmra.mrb[0].mxu0 %v2155
      %v2205 = vpop.f32.mrb[0].mxu0
      %v2206 = vadd.f32 0.0, %v2205
      %v2207 = vpop.f32.mrb[0].mxu0
      %v2208 = vpop.f32.mrb[0].mxu0
      %v2209 = vadd.f32 0.0, %v2208
      %v2210 = vpop.f32.mrb[0].mxu0
      %2211 = vmatprep.mubr.bf16.mxu0 0
      %2212 = vmatmul.mubr.bf16.gmra.mrb[0].mxu0 %v2158
      %v2213 = vpop.f32.mrb[0].mxu0
      %v2214 = vadd.f32 0.0, %v2213
      %v2215 = vpop.f32.mrb[0].mxu0
      %v2216 = vpop.f32.mrb[0].mxu0
      %v2217 = vadd.f32 0.0, %v2216
      %v2218 = vpop.f32.mrb[0].mxu0
      %2219 = vmatprep.mubr.bf16.mxu0 0
      %2220 = vmatmul.mubr.bf16.gmra.mrb[0].mxu0 %v2161
      %v2221 = vpop.f32.mrb[0].mxu0
      %v2222 = vadd.f32 0.0, %v2221
      %v2223 = vpop.f32.mrb[0].mxu0
      %v2224 = vpop.f32.mrb[0].mxu0
      %v2225 = vadd.f32 0.0, %v2224
      %v2226 = vpop.f32.mrb[0].mxu0
      %2227 = vdwg.mxu0
      %2228 = vrot.lane.b32.xlu0 %v521, 64
      %v2229 = vpop.permute.xlu0 %2228
      %v2232 = vsel %vm1331, %v2044, 0
      %v2235 = vsel %vm1331, %v2045, 0
      %v2238 = vsel %vm1331, %v2046, 0
      %v2241 = vsel %vm1331, %v2047, 0
      %2243 = vmatprep.subr.bf16.mxu0 0
      %2244 = vmatpush1.bf16.msra.mxu0 %v2229
      %2245 = vmatprep.subr.bf16.mxu0 0
      %2246 = vmatpush1.bf16.msra.mxu0 0
      %2247 = vmatprep.subr.bf16.mxu0 0
      %2248 = vmatpush1.bf16.msra.mxu0 0
      %2249 = vmatprep.subr.bf16.mxu0 0
      %2250 = vmatpush1.bf16.msra.mxu0 0
      %2251 = vmatprep.subr.bf16.mxu0 0
      %2252 = vmatpush1.bf16.msra.mxu0 0
      %2253 = vmatprep.subr.bf16.mxu0 0
      %2254 = vmatpush1.bf16.msra.mxu0 0
      %2255 = vmatprep.subr.bf16.mxu0 0
      %2256 = vmatpush1.bf16.msra.mxu0 0
      %2257 = vmatprep.subr.bf16.mxu0 0
      %2258 = vmatpush1.bf16.msra.mxu0 0
      %2259 = vmatprep.subr.bf16.mxu0 0
      %2260 = vmatpush1.bf16.msra.mxu0 0
      %2261 = vmatprep.subr.bf16.mxu0 0
      %2262 = vmatpush1.bf16.msra.mxu0 0
      %2263 = vmatprep.subr.bf16.mxu0 0
      %2264 = vmatpush1.bf16.msra.mxu0 0
      %2265 = vmatprep.subr.bf16.mxu0 0
      %2266 = vmatpush1.bf16.msra.mxu0 0
      %2267 = vmatprep.subr.bf16.mxu0 0
      %2268 = vmatpush1.bf16.msra.mxu0 0
      %2269 = vmatprep.subr.bf16.mxu0 0
      %2270 = vmatpush1.bf16.msra.mxu0 0
      %2271 = vmatprep.subr.bf16.mxu0 0
      %2272 = vmatpush1.bf16.msra.mxu0 0
      %2273 = vmatprep.subr.bf16.mxu0 0
      %2274 = vmatpush1.bf16.msra.mxu0 0
      %2275 = vmatprep.mubr.bf16.mxu0 0
      %2276 = vmatmul.mubr.bf16.gmra.mrb[0].mxu0 %v2232
      %v2277 = vpop.f32.mrb[0].mxu0
      %v2278 = vadd.f32 0.0, %v2277
      %v2279 = vpop.f32.mrb[0].mxu0
      %v2280 = vpop.f32.mrb[0].mxu0
      %v2281 = vadd.f32 0.0, %v2280
      %v2282 = vpop.f32.mrb[0].mxu0
      %2283 = vmatprep.mubr.bf16.mxu0 0
      %2284 = vmatmul.mubr.bf16.gmra.mrb[0].mxu0 %v2235
      %v2285 = vpop.f32.mrb[0].mxu0
      %v2286 = vadd.f32 0.0, %v2285
      %v2287 = vpop.f32.mrb[0].mxu0
      %v2288 = vpop.f32.mrb[0].mxu0
      %v2289 = vadd.f32 0.0, %v2288
      %v2290 = vpop.f32.mrb[0].mxu0
      %2291 = vmatprep.mubr.bf16.mxu0 0
      %2292 = vmatmul.mubr.bf16.gmra.mrb[0].mxu0 %v2238
      %v2293 = vpop.f32.mrb[0].mxu0
      %v2294 = vadd.f32 0.0, %v2293
      %v2295 = vpop.f32.mrb[0].mxu0
      %v2296 = vpop.f32.mrb[0].mxu0
      %v2297 = vadd.f32 0.0, %v2296
      %v2298 = vpop.f32.mrb[0].mxu0
      %2299 = vmatprep.mubr.bf16.mxu0 0
      %2300 = vmatmul.mubr.bf16.gmra.mrb[0].mxu0 %v2241
      %v2301 = vpop.f32.mrb[0].mxu0
      %v2302 = vadd.f32 0.0, %v2301
      %v2303 = vpop.f32.mrb[0].mxu0
      %v2304 = vpop.f32.mrb[0].mxu0
      %v2305 = vadd.f32 0.0, %v2304
      %v2306 = vpop.f32.mrb[0].mxu0
      %2307 = vdwg.mxu0
      %2308 = vrot.lane.b32.xlu0 %v522, 64
      %v2309 = vpop.permute.xlu0 %2308
      %v2312 = vsel %vm1331, %v2048, 0
      %v2315 = vsel %vm1331, %v2049, 0
      %v2318 = vsel %vm1331, %v2050, 0
      %v2321 = vsel %vm1331, %v2051, 0
      %2323 = vmatprep.subr.bf16.mxu0 0
      %2324 = vmatpush1.bf16.msra.mxu0 %v2309
      %2325 = vmatprep.subr.bf16.mxu0 0
      %2326 = vmatpush1.bf16.msra.mxu0 0
      %2327 = vmatprep.subr.bf16.mxu0 0
      %2328 = vmatpush1.bf16.msra.mxu0 0
      %2329 = vmatprep.subr.bf16.mxu0 0
      %2330 = vmatpush1.bf16.msra.mxu0 0
      %2331 = vmatprep.subr.bf16.mxu0 0
      %2332 = vmatpush1.bf16.msra.mxu0 0
      %2333 = vmatprep.subr.bf16.mxu0 0
      %2334 = vmatpush1.bf16.msra.mxu0 0
      %2335 = vmatprep.subr.bf16.mxu0 0
      %2336 = vmatpush1.bf16.msra.mxu0 0
      %2337 = vmatprep.subr.bf16.mxu0 0
      %2338 = vmatpush1.bf16.msra.mxu0 0
      %2339 = vmatprep.subr.bf16.mxu0 0
      %2340 = vmatpush1.bf16.msra.mxu0 0
      %2341 = vmatprep.subr.bf16.mxu0 0
      %2342 = vmatpush1.bf16.msra.mxu0 0
      %2343 = vmatprep.subr.bf16.mxu0 0
      %2344 = vmatpush1.bf16.msra.mxu0 0
      %2345 = vmatprep.subr.bf16.mxu0 0
      %2346 = vmatpush1.bf16.msra.mxu0 0
      %2347 = vmatprep.subr.bf16.mxu0 0
      %2348 = vmatpush1.bf16.msra.mxu0 0
      %2349 = vmatprep.subr.bf16.mxu0 0
      %2350 = vmatpush1.bf16.msra.mxu0 0
      %2351 = vmatprep.subr.bf16.mxu0 0
      %2352 = vmatpush1.bf16.msra.mxu0 0
      %2353 = vmatprep.subr.bf16.mxu0 0
      %2354 = vmatpush1.bf16.msra.mxu0 0
      %2355 = vmatprep.mubr.bf16.mxu0 0
      %2356 = vmatmul.mubr.bf16.gmra.mrb[0].mxu0 %v2312
      %v2357 = vpop.f32.mrb[0].mxu0
      %v2358 = vadd.f32 0.0, %v2357
      %v2359 = vpop.f32.mrb[0].mxu0
      %v2360 = vpop.f32.mrb[0].mxu0
      %v2361 = vadd.f32 0.0, %v2360
      %v2362 = vpop.f32.mrb[0].mxu0
      %2363 = vmatprep.mubr.bf16.mxu0 0
      %2364 = vmatmul.mubr.bf16.gmra.mrb[0].mxu0 %v2315
      %v2365 = vpop.f32.mrb[0].mxu0
      %v2366 = vadd.f32 0.0, %v2365
      %v2367 = vpop.f32.mrb[0].mxu0
      %v2368 = vpop.f32.mrb[0].mxu0
      %v2369 = vadd.f32 0.0, %v2368
      %v2370 = vpop.f32.mrb[0].mxu0
      %2371 = vmatprep.mubr.bf16.mxu0 0
      %2372 = vmatmul.mubr.bf16.gmra.mrb[0].mxu0 %v2318
      %v2373 = vpop.f32.mrb[0].mxu0
      %v2374 = vadd.f32 0.0, %v2373
      %v2375 = vpop.f32.mrb[0].mxu0
      %v2376 = vpop.f32.mrb[0].mxu0
      %v2377 = vadd.f32 0.0, %v2376
      %v2378 = vpop.f32.mrb[0].mxu0
      %2379 = vmatprep.mubr.bf16.mxu0 0
      %2380 = vmatmul.mubr.bf16.gmra.mrb[0].mxu0 %v2321
      %v2381 = vpop.f32.mrb[0].mxu0
      %v2382 = vadd.f32 0.0, %v2381
      %v2383 = vpop.f32.mrb[0].mxu0
      %v2384 = vpop.f32.mrb[0].mxu0
      %v2385 = vadd.f32 0.0, %v2384
      %v2386 = vpop.f32.mrb[0].mxu0
      %2387 = vdwg.mxu0
      %2388 = vrot.lane.b32.xlu0 %v523, 64
      %v2389 = vpop.permute.xlu0 %2388
      %v2392 = vsel %vm1331, %v2052, 0
      %v2395 = vsel %vm1331, %v2053, 0
      %v2398 = vsel %vm1331, %v2054, 0
      %v2401 = vsel %vm1331, %v2055, 0
      %2403 = vmatprep.subr.bf16.mxu0 0
      %2404 = vmatpush1.bf16.msra.mxu0 %v2389
      %2405 = vmatprep.subr.bf16.mxu0 0
      %2406 = vmatpush1.bf16.msra.mxu0 0
      %2407 = vmatprep.subr.bf16.mxu0 0
      %2408 = vmatpush1.bf16.msra.mxu0 0
      %2409 = vmatprep.subr.bf16.mxu0 0
      %2410 = vmatpush1.bf16.msra.mxu0 0
      %2411 = vmatprep.subr.bf16.mxu0 0
      %2412 = vmatpush1.bf16.msra.mxu0 0
      %2413 = vmatprep.subr.bf16.mxu0 0
      %2414 = vmatpush1.bf16.msra.mxu0 0
      %2415 = vmatprep.subr.bf16.mxu0 0
      %2416 = vmatpush1.bf16.msra.mxu0 0
      %2417 = vmatprep.subr.bf16.mxu0 0
      %2418 = vmatpush1.bf16.msra.mxu0 0
      %2419 = vmatprep.subr.bf16.mxu0 0
      %2420 = vmatpush1.bf16.msra.mxu0 0
      %2421 = vmatprep.subr.bf16.mxu0 0
      %2422 = vmatpush1.bf16.msra.mxu0 0
      %2423 = vmatprep.subr.bf16.mxu0 0
      %2424 = vmatpush1.bf16.msra.mxu0 0
      %2425 = vmatprep.subr.bf16.mxu0 0
      %2426 = vmatpush1.bf16.msra.mxu0 0
      %2427 = vmatprep.subr.bf16.mxu0 0
      %2428 = vmatpush1.bf16.msra.mxu0 0
      %2429 = vmatprep.subr.bf16.mxu0 0
      %2430 = vmatpush1.bf16.msra.mxu0 0
      %2431 = vmatprep.subr.bf16.mxu0 0
      %2432 = vmatpush1.bf16.msra.mxu0 0
      %2433 = vmatprep.subr.bf16.mxu0 0
      %2434 = vmatpush1.bf16.msra.mxu0 0
      %2435 = vmatprep.mubr.bf16.mxu0 0
      %2436 = vmatmul.mubr.bf16.gmra.mrb[0].mxu0 %v2392
      %v2437 = vpop.f32.mrb[0].mxu0
      %v2438 = vadd.f32 0.0, %v2437
      %v2439 = vpop.f32.mrb[0].mxu0
      %v2440 = vpop.f32.mrb[0].mxu0
      %v2441 = vadd.f32 0.0, %v2440
      %v2442 = vpop.f32.mrb[0].mxu0
      %2443 = vmatprep.mubr.bf16.mxu0 0
      %2444 = vmatmul.mubr.bf16.gmra.mrb[0].mxu0 %v2395
      %v2445 = vpop.f32.mrb[0].mxu0
      %v2446 = vadd.f32 0.0, %v2445
      %v2447 = vpop.f32.mrb[0].mxu0
      %v2448 = vpop.f32.mrb[0].mxu0
      %v2449 = vadd.f32 0.0, %v2448
      %v2450 = vpop.f32.mrb[0].mxu0
      %2451 = vmatprep.mubr.bf16.mxu0 0
      %2452 = vmatmul.mubr.bf16.gmra.mrb[0].mxu0 %v2398
      %v2453 = vpop.f32.mrb[0].mxu0
      %v2454 = vadd.f32 0.0, %v2453
      %v2455 = vpop.f32.mrb[0].mxu0
      %v2456 = vpop.f32.mrb[0].mxu0
      %v2457 = vadd.f32 0.0, %v2456
      %v2458 = vpop.f32.mrb[0].mxu0
      %2459 = vmatprep.mubr.bf16.mxu0 0
      %2460 = vmatmul.mubr.bf16.gmra.mrb[0].mxu0 %v2401
      %v2461 = vpop.f32.mrb[0].mxu0
      %v2462 = vadd.f32 0.0, %v2461
      %v2463 = vpop.f32.mrb[0].mxu0
      %v2464 = vpop.f32.mrb[0].mxu0
      %v2465 = vadd.f32 0.0, %v2464
      %v2466 = vpop.f32.mrb[0].mxu0
      %2467 = vdwg.mxu0
      %2468 = vrot.lane.b32.xlu0 %v524, 64
      %v2469 = vpop.permute.xlu0 %2468
      %v2472 = vsel %vm1331, %v2056, 0
      %v2475 = vsel %vm1331, %v2057, 0
      %v2478 = vsel %vm1331, %v2058, 0
      %v2481 = vsel %vm1331, %v2059, 0
      %2483 = vmatprep.subr.bf16.mxu0 0
      %2484 = vmatpush1.bf16.msra.mxu0 %v2469
      %2485 = vmatprep.subr.bf16.mxu0 0
      %2486 = vmatpush1.bf16.msra.mxu0 0
      %2487 = vmatprep.subr.bf16.mxu0 0
      %2488 = vmatpush1.bf16.msra.mxu0 0
      %2489 = vmatprep.subr.bf16.mxu0 0
      %2490 = vmatpush1.bf16.msra.mxu0 0
      %2491 = vmatprep.subr.bf16.mxu0 0
      %2492 = vmatpush1.bf16.msra.mxu0 0
      %2493 = vmatprep.subr.bf16.mxu0 0
      %2494 = vmatpush1.bf16.msra.mxu0 0
      %2495 = vmatprep.subr.bf16.mxu0 0
      %2496 = vmatpush1.bf16.msra.mxu0 0
      %2497 = vmatprep.subr.bf16.mxu0 0
      %2498 = vmatpush1.bf16.msra.mxu0 0
      %2499 = vmatprep.subr.bf16.mxu0 0
      %2500 = vmatpush1.bf16.msra.mxu0 0
      %2501 = vmatprep.subr.bf16.mxu0 0
      %2502 = vmatpush1.bf16.msra.mxu0 0
      %2503 = vmatprep.subr.bf16.mxu0 0
      %2504 = vmatpush1.bf16.msra.mxu0 0
      %2505 = vmatprep.subr.bf16.mxu0 0
      %2506 = vmatpush1.bf16.msra.mxu0 0
      %2507 = vmatprep.subr.bf16.mxu0 0
      %2508 = vmatpush1.bf16.msra.mxu0 0
      %2509 = vmatprep.subr.bf16.mxu0 0
      %2510 = vmatpush1.bf16.msra.mxu0 0
      %2511 = vmatprep.subr.bf16.mxu0 0
      %2512 = vmatpush1.bf16.msra.mxu0 0
      %2513 = vmatprep.subr.bf16.mxu0 0
      %2514 = vmatpush1.bf16.msra.mxu0 0
      %2515 = vmatprep.mubr.bf16.mxu0 0
      %2516 = vmatmul.mubr.bf16.gmra.mrb[0].mxu0 %v2472
      %v2517 = vpop.f32.mrb[0].mxu0
      %v2518 = vadd.f32 0.0, %v2517
      %v2519 = vpop.f32.mrb[0].mxu0
      %v2520 = vpop.f32.mrb[0].mxu0
      %v2521 = vadd.f32 0.0, %v2520
      %v2522 = vpop.f32.mrb[0].mxu0
      %2523 = vmatprep.mubr.bf16.mxu0 0
      %2524 = vmatmul.mubr.bf16.gmra.mrb[0].mxu0 %v2475
      %v2525 = vpop.f32.mrb[0].mxu0
      %v2526 = vadd.f32 0.0, %v2525
      %v2527 = vpop.f32.mrb[0].mxu0
      %v2528 = vpop.f32.mrb[0].mxu0
      %v2529 = vadd.f32 0.0, %v2528
      %v2530 = vpop.f32.mrb[0].mxu0
      %2531 = vmatprep.mubr.bf16.mxu0 0
      %2532 = vmatmul.mubr.bf16.gmra.mrb[0].mxu0 %v2478
      %v2533 = vpop.f32.mrb[0].mxu0
      %v2534 = vadd.f32 0.0, %v2533
      %v2535 = vpop.f32.mrb[0].mxu0
      %v2536 = vpop.f32.mrb[0].mxu0
      %v2537 = vadd.f32 0.0, %v2536
      %v2538 = vpop.f32.mrb[0].mxu0
      %2539 = vmatprep.mubr.bf16.mxu0 0
      %2540 = vmatmul.mubr.bf16.gmra.mrb[0].mxu0 %v2481
      %v2541 = vpop.f32.mrb[0].mxu0
      %v2542 = vadd.f32 0.0, %v2541
      %v2543 = vpop.f32.mrb[0].mxu0
      %v2544 = vpop.f32.mrb[0].mxu0
      %v2545 = vadd.f32 0.0, %v2544
      %v2546 = vpop.f32.mrb[0].mxu0
      %2547 = vdwg.mxu0
      %2548 = vrot.lane.b32.xlu0 %v525, 64
      %v2549 = vpop.permute.xlu0 %2548
      %v2552 = vsel %vm1331, %v2060, 0
      %v2555 = vsel %vm1331, %v2061, 0
      %v2558 = vsel %vm1331, %v2062, 0
      %v2561 = vsel %vm1331, %v2063, 0
      %2563 = vmatprep.subr.bf16.mxu0 0
      %2564 = vmatpush1.bf16.msra.mxu0 %v2549
      %2565 = vmatprep.subr.bf16.mxu0 0
      %2566 = vmatpush1.bf16.msra.mxu0 0
      %2567 = vmatprep.subr.bf16.mxu0 0
      %2568 = vmatpush1.bf16.msra.mxu0 0
      %2569 = vmatprep.subr.bf16.mxu0 0
      %2570 = vmatpush1.bf16.msra.mxu0 0
      %2571 = vmatprep.subr.bf16.mxu0 0
      %2572 = vmatpush1.bf16.msra.mxu0 0
      %2573 = vmatprep.subr.bf16.mxu0 0
      %2574 = vmatpush1.bf16.msra.mxu0 0
      %2575 = vmatprep.subr.bf16.mxu0 0
      %2576 = vmatpush1.bf16.msra.mxu0 0
      %2577 = vmatprep.subr.bf16.mxu0 0
      %2578 = vmatpush1.bf16.msra.mxu0 0
      %2579 = vmatprep.subr.bf16.mxu0 0
      %2580 = vmatpush1.bf16.msra.mxu0 0
      %2581 = vmatprep.subr.bf16.mxu0 0
      %2582 = vmatpush1.bf16.msra.mxu0 0
      %2583 = vmatprep.subr.bf16.mxu0 0
      %2584 = vmatpush1.bf16.msra.mxu0 0
      %2585 = vmatprep.subr.bf16.mxu0 0
      %2586 = vmatpush1.bf16.msra.mxu0 0
      %2587 = vmatprep.subr.bf16.mxu0 0
      %2588 = vmatpush1.bf16.msra.mxu0 0
      %2589 = vmatprep.subr.bf16.mxu0 0
      %2590 = vmatpush1.bf16.msra.mxu0 0
      %2591 = vmatprep.subr.bf16.mxu0 0
      %2592 = vmatpush1.bf16.msra.mxu0 0
      %2593 = vmatprep.subr.bf16.mxu0 0
      %2594 = vmatpush1.bf16.msra.mxu0 0
      %2595 = vmatprep.mubr.bf16.mxu0 0
      %2596 = vmatmul.mubr.bf16.gmra.mrb[0].mxu0 %v2552
      %v2597 = vpop.f32.mrb[0].mxu0
      %v2598 = vadd.f32 0.0, %v2597
      %v2599 = vpop.f32.mrb[0].mxu0
      %v2600 = vpop.f32.mrb[0].mxu0
      %v2601 = vadd.f32 0.0, %v2600
      %v2602 = vpop.f32.mrb[0].mxu0
      %2603 = vmatprep.mubr.bf16.mxu0 0
      %2604 = vmatmul.mubr.bf16.gmra.mrb[0].mxu0 %v2555
      %v2605 = vpop.f32.mrb[0].mxu0
      %v2606 = vadd.f32 0.0, %v2605
      %v2607 = vpop.f32.mrb[0].mxu0
      %v2608 = vpop.f32.mrb[0].mxu0
      %v2609 = vadd.f32 0.0, %v2608
      %v2610 = vpop.f32.mrb[0].mxu0
      %2611 = vmatprep.mubr.bf16.mxu0 0
      %2612 = vmatmul.mubr.bf16.gmra.mrb[0].mxu0 %v2558
      %v2613 = vpop.f32.mrb[0].mxu0
      %v2614 = vadd.f32 0.0, %v2613
      %v2615 = vpop.f32.mrb[0].mxu0
      %v2616 = vpop.f32.mrb[0].mxu0
      %v2617 = vadd.f32 0.0, %v2616
      %v2618 = vpop.f32.mrb[0].mxu0
      %2619 = vmatprep.mubr.bf16.mxu0 0
      %2620 = vmatmul.mubr.bf16.gmra.mrb[0].mxu0 %v2561
      %v2621 = vpop.f32.mrb[0].mxu0
      %v2622 = vadd.f32 0.0, %v2621
      %v2623 = vpop.f32.mrb[0].mxu0
      %v2624 = vpop.f32.mrb[0].mxu0
      %v2625 = vadd.f32 0.0, %v2624
      %v2626 = vpop.f32.mrb[0].mxu0
      %2627 = vdwg.mxu0
      %2628 = vrot.lane.b32.xlu0 %v526, 64
      %v2629 = vpop.permute.xlu0 %2628
      %v2632 = vsel %vm1331, %v2064, 0
      %v2635 = vsel %vm1331, %v2065, 0
      %v2638 = vsel %vm1331, %v2066, 0
      %v2641 = vsel %vm1331, %v2067, 0
      %2643 = vmatprep.subr.bf16.mxu0 0
      %2644 = vmatpush1.bf16.msra.mxu0 %v2629
      %2645 = vmatprep.subr.bf16.mxu0 0
      %2646 = vmatpush1.bf16.msra.mxu0 0
      %2647 = vmatprep.subr.bf16.mxu0 0
      %2648 = vmatpush1.bf16.msra.mxu0 0
      %2649 = vmatprep.subr.bf16.mxu0 0
      %2650 = vmatpush1.bf16.msra.mxu0 0
      %2651 = vmatprep.subr.bf16.mxu0 0
      %2652 = vmatpush1.bf16.msra.mxu0 0
      %2653 = vmatprep.subr.bf16.mxu0 0
      %2654 = vmatpush1.bf16.msra.mxu0 0
      %2655 = vmatprep.subr.bf16.mxu0 0
      %2656 = vmatpush1.bf16.msra.mxu0 0
      %2657 = vmatprep.subr.bf16.mxu0 0
      %2658 = vmatpush1.bf16.msra.mxu0 0
      %2659 = vmatprep.subr.bf16.mxu0 0
      %2660 = vmatpush1.bf16.msra.mxu0 0
      %2661 = vmatprep.subr.bf16.mxu0 0
      %2662 = vmatpush1.bf16.msra.mxu0 0
      %2663 = vmatprep.subr.bf16.mxu0 0
      %2664 = vmatpush1.bf16.msra.mxu0 0
      %2665 = vmatprep.subr.bf16.mxu0 0
      %2666 = vmatpush1.bf16.msra.mxu0 0
      %2667 = vmatprep.subr.bf16.mxu0 0
      %2668 = vmatpush1.bf16.msra.mxu0 0
      %2669 = vmatprep.subr.bf16.mxu0 0
      %2670 = vmatpush1.bf16.msra.mxu0 0
      %2671 = vmatprep.subr.bf16.mxu0 0
      %2672 = vmatpush1.bf16.msra.mxu0 0
      %2673 = vmatprep.subr.bf16.mxu0 0
      %2674 = vmatpush1.bf16.msra.mxu0 0
      %2675 = vmatprep.mubr.bf16.mxu0 0
      %2676 = vmatmul.mubr.bf16.gmra.mrb[0].mxu0 %v2632
      %v2677 = vpop.f32.mrb[0].mxu0
      %v2678 = vadd.f32 0.0, %v2677
      %v2679 = vpop.f32.mrb[0].mxu0
      %v2680 = vpop.f32.mrb[0].mxu0
      %v2681 = vadd.f32 0.0, %v2680
      %v2682 = vpop.f32.mrb[0].mxu0
      %2683 = vmatprep.mubr.bf16.mxu0 0
      %2684 = vmatmul.mubr.bf16.gmra.mrb[0].mxu0 %v2635
      %v2685 = vpop.f32.mrb[0].mxu0
      %v2686 = vadd.f32 0.0, %v2685
      %v2687 = vpop.f32.mrb[0].mxu0
      %v2688 = vpop.f32.mrb[0].mxu0
      %v2689 = vadd.f32 0.0, %v2688
      %v2690 = vpop.f32.mrb[0].mxu0
      %2691 = vmatprep.mubr.bf16.mxu0 0
      %2692 = vmatmul.mubr.bf16.gmra.mrb[0].mxu0 %v2638
      %v2693 = vpop.f32.mrb[0].mxu0
      %v2694 = vadd.f32 0.0, %v2693
      %v2695 = vpop.f32.mrb[0].mxu0
      %v2696 = vpop.f32.mrb[0].mxu0
      %v2697 = vadd.f32 0.0, %v2696
      %v2698 = vpop.f32.mrb[0].mxu0
      %2699 = vmatprep.mubr.bf16.mxu0 0
      %2700 = vmatmul.mubr.bf16.gmra.mrb[0].mxu0 %v2641
      %v2701 = vpop.f32.mrb[0].mxu0
      %v2702 = vadd.f32 0.0, %v2701
      %v2703 = vpop.f32.mrb[0].mxu0
      %v2704 = vpop.f32.mrb[0].mxu0
      %v2705 = vadd.f32 0.0, %v2704
      %v2706 = vpop.f32.mrb[0].mxu0
      %2707 = vdwg.mxu0
      %v2712 = vlaneseq
      %v2713 = vshrl.u32 %v2712, 7
      %v2714 = vsub.s32 0, %v2713
      %v2715 = vrot.slane %v527, %v2714
      %v2716 = vlaneseq
      %v2717 = vshrl.u32 %v2716, 7
      %v2718 = vsub.s32 0, %v2717
      %v2719 = vrot.slane %v528, %v2718
      %v2720 = vlaneseq
      %v2721 = vshrl.u32 %v2720, 7
      %v2722 = vsub.s32 0, %v2721
      %v2723 = vrot.slane %v529, %v2722
      %v2724 = vlaneseq
      %v2725 = vshrl.u32 %v2724, 7
      %v2726 = vsub.s32 0, %v2725
      %v2727 = vrot.slane %v530, %v2726
      %v2732 = vmul.f32 %v2118, %v2715
      %v2733 = vmul.f32 %v2121, %v2715
      %v2734 = vmul.f32 %v2126, %v2719
      %v2735 = vmul.f32 %v2129, %v2719
      %v2736 = vmul.f32 %v2134, %v2723
      %v2737 = vmul.f32 %v2137, %v2723
      %v2738 = vmul.f32 %v2142, %v2727
      %v2739 = vmul.f32 %v2145, %v2727
      %v2740 = vmul.f32 %v2198, %v2715
      %v2741 = vmul.f32 %v2201, %v2715
      %v2742 = vmul.f32 %v2206, %v2719
      %v2743 = vmul.f32 %v2209, %v2719
      %v2744 = vmul.f32 %v2214, %v2723
      %v2745 = vmul.f32 %v2217, %v2723
      %v2746 = vmul.f32 %v2222, %v2727
      %v2747 = vmul.f32 %v2225, %v2727
      %v2748 = vmul.f32 %v2278, %v2715
      %v2749 = vmul.f32 %v2281, %v2715
      %v2750 = vmul.f32 %v2286, %v2719
      %v2751 = vmul.f32 %v2289, %v2719
      %v2752 = vmul.f32 %v2294, %v2723
      %v2753 = vmul.f32 %v2297, %v2723
      %v2754 = vmul.f32 %v2302, %v2727
      %v2755 = vmul.f32 %v2305, %v2727
      %v2756 = vmul.f32 %v2358, %v2715
      %v2757 = vmul.f32 %v2361, %v2715
      %v2758 = vmul.f32 %v2366, %v2719
      %v2759 = vmul.f32 %v2369, %v2719
      %v2760 = vmul.f32 %v2374, %v2723
      %v2761 = vmul.f32 %v2377, %v2723
      %v2762 = vmul.f32 %v2382, %v2727
      %v2763 = vmul.f32 %v2385, %v2727
      %v2764 = vmul.f32 %v2438, %v2715
      %v2765 = vmul.f32 %v2441, %v2715
      %v2766 = vmul.f32 %v2446, %v2719
      %v2767 = vmul.f32 %v2449, %v2719
      %v2768 = vmul.f32 %v2454, %v2723
      %v2769 = vmul.f32 %v2457, %v2723
      %v2770 = vmul.f32 %v2462, %v2727
      %v2771 = vmul.f32 %v2465, %v2727
      %v2772 = vmul.f32 %v2518, %v2715
      %v2773 = vmul.f32 %v2521, %v2715
      %v2774 = vmul.f32 %v2526, %v2719
      %v2775 = vmul.f32 %v2529, %v2719
      %v2776 = vmul.f32 %v2534, %v2723
      %v2777 = vmul.f32 %v2537, %v2723
      %v2778 = vmul.f32 %v2542, %v2727
      %v2779 = vmul.f32 %v2545, %v2727
      %v2780 = vmul.f32 %v2598, %v2715
      %v2781 = vmul.f32 %v2601, %v2715
      %v2782 = vmul.f32 %v2606, %v2719
      %v2783 = vmul.f32 %v2609, %v2719
      %v2784 = vmul.f32 %v2614, %v2723
      %v2785 = vmul.f32 %v2617, %v2723
      %v2786 = vmul.f32 %v2622, %v2727
      %v2787 = vmul.f32 %v2625, %v2727
      %v2788 = vmul.f32 %v2678, %v2715
      %v2789 = vmul.f32 %v2681, %v2715
      %v2790 = vmul.f32 %v2686, %v2719
      %v2791 = vmul.f32 %v2689, %v2719
      %v2792 = vmul.f32 %v2694, %v2723
      %v2793 = vmul.f32 %v2697, %v2723
      %v2794 = vmul.f32 %v2702, %v2727
      %v2795 = vmul.f32 %v2705, %v2727
      %v2796 = vsel %vm397, %v2732, 0.0
      %v2797 = vsel %vm397, %v2734, 0.0
      %v2798 = vadd.f32 %v2796, %v2797
      %v2799 = vsel %vm397, %v2736, 0.0
      %v2800 = vadd.f32 %v2798, %v2799
      %v2801 = vsel %vm397, %v2738, 0.0
      %v2802 = vadd.f32 %v2800, %v2801
      %v2803 = vsel %vm397, %v2733, 0.0
      %v2804 = vsel %vm397, %v2735, 0.0
      %v2805 = vadd.f32 %v2803, %v2804
      %v2806 = vsel %vm397, %v2737, 0.0
      %v2807 = vadd.f32 %v2805, %v2806
      %v2808 = vsel %vm397, %v2739, 0.0
      %v2809 = vadd.f32 %v2807, %v2808
      %v2810 = vsel %vm397, %v2740, 0.0
      %v2811 = vsel %vm397, %v2742, 0.0
      %v2812 = vadd.f32 %v2810, %v2811
      %v2813 = vsel %vm397, %v2744, 0.0
      %v2814 = vadd.f32 %v2812, %v2813
      %v2815 = vsel %vm397, %v2746, 0.0
      %v2816 = vadd.f32 %v2814, %v2815
      %v2817 = vsel %vm397, %v2741, 0.0
      %v2818 = vsel %vm397, %v2743, 0.0
      %v2819 = vadd.f32 %v2817, %v2818
      %v2820 = vsel %vm397, %v2745, 0.0
      %v2821 = vadd.f32 %v2819, %v2820
      %v2822 = vsel %vm397, %v2747, 0.0
      %v2823 = vadd.f32 %v2821, %v2822
      %v2824 = vsel %vm397, %v2748, 0.0
      %v2825 = vsel %vm397, %v2750, 0.0
      %v2826 = vadd.f32 %v2824, %v2825
      %v2827 = vsel %vm397, %v2752, 0.0
      %v2828 = vadd.f32 %v2826, %v2827
      %v2829 = vsel %vm397, %v2754, 0.0
      %v2830 = vadd.f32 %v2828, %v2829
      %v2831 = vsel %vm397, %v2749, 0.0
      %v2832 = vsel %vm397, %v2751, 0.0
      %v2833 = vadd.f32 %v2831, %v2832
      %v2834 = vsel %vm397, %v2753, 0.0
      %v2835 = vadd.f32 %v2833, %v2834
      %v2836 = vsel %vm397, %v2755, 0.0
      %v2837 = vadd.f32 %v2835, %v2836
      %v2838 = vsel %vm397, %v2756, 0.0
      %v2839 = vsel %vm397, %v2758, 0.0
      %v2840 = vadd.f32 %v2838, %v2839
      %v2841 = vsel %vm397, %v2760, 0.0
      %v2842 = vadd.f32 %v2840, %v2841
      %v2843 = vsel %vm397, %v2762, 0.0
      %v2844 = vadd.f32 %v2842, %v2843
      %v2845 = vsel %vm397, %v2757, 0.0
      %v2846 = vsel %vm397, %v2759, 0.0
      %v2847 = vadd.f32 %v2845, %v2846
      %v2848 = vsel %vm397, %v2761, 0.0
      %v2849 = vadd.f32 %v2847, %v2848
      %v2850 = vsel %vm397, %v2763, 0.0
      %v2851 = vadd.f32 %v2849, %v2850
      %v2852 = vsel %vm397, %v2764, 0.0
      %v2853 = vsel %vm397, %v2766, 0.0
      %v2854 = vadd.f32 %v2852, %v2853
      %v2855 = vsel %vm397, %v2768, 0.0
      %v2856 = vadd.f32 %v2854, %v2855
      %v2857 = vsel %vm397, %v2770, 0.0
      %v2858 = vadd.f32 %v2856, %v2857
      %v2859 = vsel %vm397, %v2765, 0.0
      %v2860 = vsel %vm397, %v2767, 0.0
      %v2861 = vadd.f32 %v2859, %v2860
      %v2862 = vsel %vm397, %v2769, 0.0
      %v2863 = vadd.f32 %v2861, %v2862
      %v2864 = vsel %vm397, %v2771, 0.0
      %v2865 = vadd.f32 %v2863, %v2864
      %v2866 = vsel %vm397, %v2772, 0.0
      %v2867 = vsel %vm397, %v2774, 0.0
      %v2868 = vadd.f32 %v2866, %v2867
      %v2869 = vsel %vm397, %v2776, 0.0
      %v2870 = vadd.f32 %v2868, %v2869
      %v2871 = vsel %vm397, %v2778, 0.0
      %v2872 = vadd.f32 %v2870, %v2871
      %v2873 = vsel %vm397, %v2773, 0.0
      %v2874 = vsel %vm397, %v2775, 0.0
      %v2875 = vadd.f32 %v2873, %v2874
      %v2876 = vsel %vm397, %v2777, 0.0
      %v2877 = vadd.f32 %v2875, %v2876
      %v2878 = vsel %vm397, %v2779, 0.0
      %v2879 = vadd.f32 %v2877, %v2878
      %v2880 = vsel %vm397, %v2780, 0.0
      %v2881 = vsel %vm397, %v2782, 0.0
      %v2882 = vadd.f32 %v2880, %v2881
      %v2883 = vsel %vm397, %v2784, 0.0
      %v2884 = vadd.f32 %v2882, %v2883
      %v2885 = vsel %vm397, %v2786, 0.0
      %v2886 = vadd.f32 %v2884, %v2885
      %v2887 = vsel %vm397, %v2781, 0.0
      %v2888 = vsel %vm397, %v2783, 0.0
      %v2889 = vadd.f32 %v2887, %v2888
      %v2890 = vsel %vm397, %v2785, 0.0
      %v2891 = vadd.f32 %v2889, %v2890
      %v2892 = vsel %vm397, %v2787, 0.0
      %v2893 = vadd.f32 %v2891, %v2892
      %v2894 = vsel %vm397, %v2788, 0.0
      %v2895 = vsel %vm397, %v2790, 0.0
      %v2896 = vadd.f32 %v2894, %v2895
      %v2897 = vsel %vm397, %v2792, 0.0
      %v2898 = vadd.f32 %v2896, %v2897
      %v2899 = vsel %vm397, %v2794, 0.0
      %v2900 = vadd.f32 %v2898, %v2899
      %v2901 = vsel %vm397, %v2789, 0.0
      %v2902 = vsel %vm397, %v2791, 0.0
      %v2903 = vadd.f32 %v2901, %v2902
      %v2904 = vsel %vm397, %v2793, 0.0
      %v2905 = vadd.f32 %v2903, %v2904
      %v2906 = vsel %vm397, %v2795, 0.0
      %v2907 = vadd.f32 %v2905, %v2906
      %v2908 = vpack.c.bf16 %v2809, %v2802
      %v2909 = vpack.c.bf16 %v2823, %v2816
      %v2910 = vpack.c.bf16 %v2837, %v2830
      %v2911 = vpack.c.bf16 %v2851, %v2844
      %v2912 = vpack.c.bf16 %v2865, %v2858
      %v2913 = vpack.c.bf16 %v2879, %v2872
      %v2914 = vpack.c.bf16 %v2893, %v2886
      %v2915 = vpack.c.bf16 %v2907, %v2900
      %v2916 = vld [vmem:[%s5] sm:$0xf]
      %v2917 = vld [vmem:[%s5 + $0x4] sm:$0xf]
      %v2918 = vld [vmem:[%s5 + $0x8] sm:$0xf]
      %v2919 = vld [vmem:[%s5 + $0xc] sm:$0xf]
      %v2920 = vld [vmem:[%s6] sm:$0xff]
      %v2921 = vld [vmem:[%s6 + $0x8] sm:$0xff]
      %v2922 = vld [vmem:[%s6 + $0x10] sm:$0xff]
      %v2923 = vld [vmem:[%s6 + $0x18] sm:$0xff]
      %2925 = vset.pattern.permute.xlu0 0
      %2926 = vperm.xlu0 %2925, %v2920
      %v2927 = vpop.permute.xlu0 %2926
      %2930 = vset.pattern.permute.xlu0 0
      %2931 = vperm.xlu0 %2930, %v2921
      %v2932 = vpop.permute.xlu0 %2931
      %2935 = vset.pattern.permute.xlu0 0
      %2936 = vperm.xlu0 %2935, %v2922
      %v2937 = vpop.permute.xlu0 %2936
      %2940 = vset.pattern.permute.xlu0 0
      %2941 = vperm.xlu0 %2940, %v2923
      %v2942 = vpop.permute.xlu0 %2941
      %v2948 = vunpack.c.l.b16 %v2916
      %v2949 = vunpack.c.l.b16 %v2917
      %v2950 = vunpack.c.l.b16 %v2918
      %v2951 = vunpack.c.l.b16 %v2919
      %v2952 = vpack.c.b16 %v2949, %v2948
      %v2953 = vpack.c.b16 %v2951, %v2950
      %v2955 = vsel %vm397, %v2952, 0
      %v2958 = vsel %vm397, %v2953, 0
      %v2961 = vsel %vm397, %v2908, 0
      %v2964 = vsel %vm397, %v2909, 0
      %v2967 = vsel %vm397, %v2910, 0
      %v2970 = vsel %vm397, %v2911, 0
      %v2973 = vsel %vm397, %v2912, 0
      %v2976 = vsel %vm397, %v2913, 0
      %v2979 = vsel %vm397, %v2914, 0
      %v2982 = vsel %vm397, %v2915, 0
      %2984 = vmatprep.subr.bf16.mxu0 0
      %2985 = vmatpush1.bf16.xpose.msra.mxu0 %v2961
      %2986 = vmatprep.subr.bf16.mxu0 0
      %2987 = vmatpush1.bf16.xpose.msra.mxu0 %v2964
      %2988 = vmatprep.subr.bf16.mxu0 0
      %2989 = vmatpush1.bf16.xpose.msra.mxu0 %v2967
      %2990 = vmatprep.subr.bf16.mxu0 0
      %2991 = vmatpush1.bf16.xpose.msra.mxu0 %v2970
      %2992 = vmatprep.subr.bf16.mxu0 0
      %2993 = vmatpush1.bf16.xpose.msra.mxu0 %v2973
      %2994 = vmatprep.subr.bf16.mxu0 0
      %2995 = vmatpush1.bf16.xpose.msra.mxu0 %v2976
      %2996 = vmatprep.subr.bf16.mxu0 0
      %2997 = vmatpush1.bf16.xpose.msra.mxu0 %v2979
      %2998 = vmatprep.subr.bf16.mxu0 0
      %2999 = vmatpush1.bf16.xpose.msra.mxu0 %v2982
      %3000 = vmatprep.subr.bf16.mxu0 0
      %3001 = vmatpush1.bf16.xpose.msra.mxu0 0
      %3002 = vmatprep.subr.bf16.mxu0 0
      %3003 = vmatpush1.bf16.xpose.msra.mxu0 0
      %3004 = vmatprep.subr.bf16.mxu0 0
      %3005 = vmatpush1.bf16.xpose.msra.mxu0 0
      %3006 = vmatprep.subr.bf16.mxu0 0
      %3007 = vmatpush1.bf16.xpose.msra.mxu0 0
      %3008 = vmatprep.subr.bf16.mxu0 0
      %3009 = vmatpush1.bf16.xpose.msra.mxu0 0
      %3010 = vmatprep.subr.bf16.mxu0 0
      %3011 = vmatpush1.bf16.xpose.msra.mxu0 0
      %3012 = vmatprep.subr.bf16.mxu0 0
      %3013 = vmatpush1.bf16.xpose.msra.mxu0 0
      %3014 = vmatprep.subr.bf16.mxu0 0
      %3015 = vmatpush1.bf16.xpose.msra.mxu0 0
      %3016 = vmatprep.mubr.bf16.mxu0 0
      %3017 = vmatmul.mubr.bf16.gmra.mrb[0].mxu0 %v2955
      %v3018 = vpop.f32.mrb[0].mxu0
      %v3019 = vadd.f32 %v2927, %v3018
      %v3020 = vpop.f32.mrb[0].mxu0
      %v3021 = vpop.f32.mrb[0].mxu0
      %v3022 = vadd.f32 %v2932, %v3021
      %v3023 = vpop.f32.mrb[0].mxu0
      %3024 = vmatprep.mubr.bf16.mxu0 0
      %3025 = vmatmul.mubr.bf16.gmra.mrb[0].mxu0 %v2958
      %v3026 = vpop.f32.mrb[0].mxu0
      %v3027 = vadd.f32 %v2937, %v3026
      %v3028 = vpop.f32.mrb[0].mxu0
      %v3029 = vpop.f32.mrb[0].mxu0
      %v3030 = vadd.f32 %v2942, %v3029
      %v3031 = vpop.f32.mrb[0].mxu0
      %3032 = vdwg.mxu0
      %3033 = vst [vmem:[%s316] sm:$0xff] %v3019
      %3034 = vst [vmem:[%s316 + $0x8] sm:$0xff] %v3022
      %3035 = vst [vmem:[%s316 + $0x10] sm:$0xff] %v3027
      %3036 = vst [vmem:[%s316 + $0x18] sm:$0xff] %v3030
      %p3037 = scmp.lt.s32.totalorder %s22, 1
      %s3038 = scalar_select %p3037, %s22, 1
      %p3039 = scmp.lt.s32.totalorder %s23, 1
      %s3040 = scalar_select %p3039, %s23, 1
      %s3041 = smul.addr %s3040, 4
      %s3042 = smul.addr %s3038, 8
      %s3043 = sadd.s32 %s3041, %s3042
      %s3044 = smul.addr %s3043, 8
      %s3045 = scalar_lea.vmem %s7, %s3044
      // Predicated region
      $region49: #{wmsa_forward.1} parent=47 // pred_check
        %p3046 = pneg %p204
      $region50: #{wmsa_forward.1} parent=47 // pred_check_branch
        %3048 = sbr.rel (%p3046) target = $region52
      $region51: #{wmsa_forward.1} parent=47 // pred_region
        _
      $region52: #{wmsa_forward.1} parent=47 // pred_fallthru
        _
    $region48: #{wmsa_forward.1} parent=5 // pred_fallthru
      _
    %p3049 = scmp.le.s32.totalorder 2, %s13
    // Predicated region
    $region53: #{wmsa_forward.1} parent=5 // pred_check
      %p3050 = pneg %p3049
    $region54: #{wmsa_forward.1} parent=5 // pred_check_branch
      %3052 = sbr.rel (%p3050) target = $region56
    $region55: #{wmsa_forward.1} parent=5 // pred_region
      %s3053 = ssub.s32 %s13, 2
      // Predicated region
      $region57: #{wmsa_forward.1} parent=55 // pred_check
        %p3054 = pneg %p210
      $region58: #{wmsa_forward.1} parent=55 // pred_check_branch
        %3056 = sbr.rel (%p3054) target = $region60
      $region59: #{wmsa_forward.1} parent=55 // pred_region
        %p3057 = scmp.lt.s32.totalorder %s24, 1
        %s3058 = scalar_select %p3057, %s24, 1
        %p3059 = scmp.lt.s32.totalorder %s25, 1
        %s3060 = scalar_select %p3059, %s25, 1
        %s3061 = smul.addr %s3060, 4
        %s3062 = smul.addr %s3058, 8
        %s3063 = sadd.s32 %s3061, %s3062
        %s3064 = smul.addr %s3063, 8
        %s3065 = scalar_lea.vmem %s7, %s3064
      $region60: #{wmsa_forward.1} parent=55 // pred_fallthru
        _
    $region56: #{wmsa_forward.1} parent=5 // pred_fallthru
      _
  $region6: #{wmsa_forward.1} parent=0 // loop_footer
    %s17 = sadd.s32 1, %s13
  $region7: #{wmsa_forward.1} parent=0 // loop_footer_branch
    %12 = sbr.rel target = $region3
  $region8: #{wmsa_forward.1} parent=0 // loop_exit
    _

</llo_original>
